<compile_context>
chip_gen: v6e
topology: v6e:2x2x1
jax: 0.10.0
libtpu: 0.0.40
codegen_flags: <defaults>
</compile_context>

<pallas_src>
import functools

import jax
import jax.numpy as jnp
from jax.experimental import pallas as pl
from jax.experimental.pallas import tpu as pltpu


def _elu(x):
    # exp(x) - 1 (not expm1) for guaranteed Mosaic lowering; diff << tolerance.
    return jnp.where(x > 0, x, jnp.exp(x) - 1.0)


def dynamics_kernel(
    # --- inputs -----------------------------------------------------------
    prev_h_ref, prev_s_ref,          # (Bp, H), (Bp, S)
    seq_ref,                         # (T, Bp, P)  P = A+E+1+2S  [act|obs|done|eps_pr|eps_po]
    w_in_ref, b_in_ref,              # (P, 3H), (1, 3H)  fused input-only projections
    w_sa_s_ref,                      # (S, H)   state part of project_state_action
    w_ih_ref, b_ih_ref,              # (H, L*3H), (1, L*3H)  GRU input gates, all layers
    w_hh_ref, b_hh_ref,              # (L, H, 3H), (L, 1, 3H)
    w_hx_ref,                        # (H, 2H)  [w_ha_h | w_ho_h] merged
    w_prior_ref, b_prior_ref,        # (H, 2S), (1, 2S)
    w_post_ref, b_post_ref,          # (H, 2S), (1, 2S)
    # --- outputs ----------------------------------------------------------
    out_ref,                         # (T, Bp, H + 6S) packed lane-dense slab
    # --- scratch ----------------------------------------------------------
    inp_scr,                         # (T, Bp, 3H)
    h_scr, s_scr,                    # (Bp, H), (Bp, S)
    *, hidden_dim, state_dim, action_dim, embed_dim, rnn_layers):
    H, S, L = hidden_dim, state_dim, rnn_layers
    A, E = action_dim, embed_dim
    G = 3 * H
    T, Bp, P = seq_ref.shape

    # Hoisted, time-batched projection of the input-only parts (one big matmul
    # instead of 3 tiny matmuls per serial step):
    #   inp[..., 0:H]   = action @ w_sa_a + b_sa
    #   inp[..., H:2H]  = action @ w_ha_a + b_ha
    #   inp[..., 2H:3H] = obs    @ w_ho_e + b_ho
    # (done/eps rows of w_in are zero.)
    seq_all = seq_ref[...]
    inp = jnp.dot(seq_all.reshape(T * Bp, P), w_in_ref[...],
                  preferred_element_type=jnp.float32) + b_in_ref[...]
    inp_scr[...] = inp.reshape(T, Bp, G)

    h_scr[...] = prev_h_ref[...]
    s_scr[...] = prev_s_ref[...]

    # Loop-invariant weight loads, hoisted once.
    w_sa_s = w_sa_s_ref[...]
    w_ih = w_ih_ref[...]
    b_ih = b_ih_ref[...]
    w_hh = w_hh_ref[...]
    b_hh = b_hh_ref[...]
    w_hx = w_hx_ref[...]
    w_prior = w_prior_ref[...]
    b_prior = b_prior_ref[...]
    w_post = w_post_ref[...]
    b_post = b_post_ref[...]

    off_done = A + E
    off_eps_pr = off_done + 1
    off_eps_po = off_eps_pr + S

    @pl.loop(0, T)
    def _step(t):
        seq_t = seq_ref[t]                         # (Bp, P)
        inp_t = inp_scr[t]                         # (Bp, 3H)
        h = h_scr[...]
        s_post = s_scr[...]

        done_t = seq_t[:, off_done:off_done + 1]
        eps_pr = seq_t[:, off_eps_pr:off_eps_pr + S]
        eps_po = seq_t[:, off_eps_po:off_eps_po + S]

        state_t = s_post * (1.0 - done_t)          # reset only the stochastic state

        # project_state_action + ELU  (action part pre-computed in inp_t[:, :H])
        sa = _elu(jnp.dot(state_t, w_sa_s, preferred_element_type=jnp.float32)
                  + inp_t[:, 0:H])

        # stacked GRU cells; input gates for all layers in one matmul
        gi_all = jnp.dot(sa, w_ih, preferred_element_type=jnp.float32) + b_ih
        for l in range(L):
            gi = gi_all[:, l * G:(l + 1) * G]
            gh = jnp.dot(h, w_hh[l], preferred_element_type=jnp.float32) + b_hh[l]
            r = jax.nn.sigmoid(gi[:, 0:H] + gh[:, 0:H])
            z = jax.nn.sigmoid(gi[:, H:2 * H] + gh[:, H:2 * H])
            n = jnp.tanh(gi[:, 2 * H:3 * H] + r * gh[:, 2 * H:3 * H])
            h = (1.0 - z) * n + z * h

        # project h once for both prior and posterior branches
        hx = jnp.dot(h, w_hx, preferred_element_type=jnp.float32)
        ha = _elu(hx[:, 0:H] + inp_t[:, H:2 * H])
        ho = _elu(hx[:, H:2 * H] + inp_t[:, 2 * H:3 * H])

        prior_params = jnp.dot(ha, w_prior, preferred_element_type=jnp.float32) + b_prior
        prior_mean = prior_params[:, 0:S]
        prior_logvar = prior_params[:, S:2 * S]
        prior_std = 1.0 + jnp.exp(prior_logvar)    # == exp(softplus(logvar))
        prior_state = prior_mean + prior_std * eps_pr

        post_params = jnp.dot(ho, w_post, preferred_element_type=jnp.float32) + b_post
        post_mean = post_params[:, 0:S]
        post_logvar = post_params[:, S:2 * S]
        post_std = 1.0 + jnp.exp(post_logvar)
        post_state = post_mean + post_std * eps_po

        h_scr[...] = h
        s_scr[...] = post_state

        # packed lane-dense output row:
        # [h | prior_state | post_state | prior_mean | prior_logvar | post_mean | post_logvar]
        out_ref[t] = jnp.concatenate(
            [h, prior_state, post_state, prior_params, post_params], axis=-1)


def init_params(key, hidden_dim, state_dim, embedding_dim, action_dim, rnn_layers):
    """Deterministic synthetic parameters, pre-transposed for `x @ W` matmuls."""
    H, S, E, A, L = hidden_dim, state_dim, embedding_dim, action_dim, rnn_layers
    ks = iter(jax.random.split(key, 32))

    def u(shape, fan_in):
        bound = 1.0 / jnp.sqrt(jnp.float32(fan_in))
        return jax.random.uniform(next(ks), shape, jnp.float32, -bound, bound)

    p = {}
    # project_state_action : Linear(A + S -> H); split into state / action parts
    w_sa = u((S + A, H), S + A)
    p["w_sa_s"], p["w_sa_a"] = w_sa[:S], w_sa[S:]
    p["b_sa"] = u((1, H), S + A)
    # GRU cells (PyTorch GRUCell(H, H)); stored transposed: (H, 3H)
    p["w_ih"] = jnp.stack([u((H, 3 * H), H) for _ in range(L)])
    p["w_hh"] = jnp.stack([u((H, 3 * H), H) for _ in range(L)])
    p["b_ih"] = jnp.stack([u((1, 3 * H), H) for _ in range(L)])
    p["b_hh"] = jnp.stack([u((1, 3 * H), H) for _ in range(L)])
    # project_hidden_action : Linear(A + H -> H)
    w_ha = u((H + A, H), H + A)
    p["w_ha_h"], p["w_ha_a"] = w_ha[:H], w_ha[H:]
    p["b_ha"] = u((1, H), H + A)
    # prior : Linear(H -> 2S)
    p["w_prior"] = u((H, 2 * S), H)
    p["b_prior"] = u((1, 2 * S), H)
    # project_hidden_observation : Linear(H + E -> H)
    w_ho = u((H + E, H), H + E)
    p["w_ho_h"], p["w_ho_e"] = w_ho[:H], w_ho[H:]
    p["b_ho"] = u((1, H), H + E)
    # posterior : Linear(H -> 2S)
    p["w_post"] = u((H, 2 * S), H)
    p["b_post"] = u((1, 2 * S), H)
    return p


def dynamics_predictor(params, prev_hidden, prev_state, actions, observations,
                       dones, eps_prior, eps_post, *, rnn_layers):
    B, T, A = actions.shape
    H = prev_hidden.shape[-1]
    S = prev_state.shape[-1]
    E = observations.shape[-1]
    L = rnn_layers

    # pad batch to the f32 sublane count (8) to avoid masked sublane accesses
    Bp = ((B + 7) // 8) * 8
    pad = Bp - B

    # one packed, time-major input slab: [action | obs | done | eps_pr | eps_po]
    seq = jnp.concatenate([actions, observations, dones, eps_prior, eps_post],
                          axis=-1).astype(jnp.float32)
    seq = jnp.transpose(seq, (1, 0, 2))                          # (T, B, P)
    if pad:
        seq = jnp.pad(seq, ((0, 0), (0, pad), (0, 0)))
        prev_h = jnp.pad(prev_hidden, ((0, pad), (0, 0)))
        prev_s = jnp.pad(prev_state, ((0, pad), (0, 0)))
    else:
        prev_h, prev_s = prev_hidden, prev_state
    P = A + E + 1 + 2 * S

    # host-side weight fusion (one-time layout plumbing, no math change)
    w_in = jnp.zeros((P, 3 * H), jnp.float32)
    w_in = w_in.at[:A, 0:H].set(params["w_sa_a"])
    w_in = w_in.at[:A, H:2 * H].set(params["w_ha_a"])
    w_in = w_in.at[A:A + E, 2 * H:3 * H].set(params["w_ho_e"])
    b_in = jnp.concatenate([params["b_sa"], params["b_ha"], params["b_ho"]], axis=-1)
    w_ih_all = jnp.transpose(params["w_ih"], (1, 0, 2)).reshape(H, L * 3 * H)
    b_ih_all = params["b_ih"].reshape(1, L * 3 * H)
    w_hx = jnp.concatenate([params["w_ha_h"], params["w_ho_h"]], axis=-1)

    kernel_inputs = (prev_h, prev_s, seq, w_in, b_in, params["w_sa_s"],
                     w_ih_all, b_ih_all, params["w_hh"], params["b_hh"],
                     w_hx, params["w_prior"], params["b_prior"],
                     params["w_post"], params["b_post"])

    OUT = H + 6 * S
    scratch_bytes = 4 * (T * Bp * 3 * H + Bp * H + Bp * S)
    total_bytes = sum(int(x.size) * x.dtype.itemsize for x in kernel_inputs)
    total_bytes += 4 * T * Bp * OUT + scratch_bytes
    vmem_limit = int(min(max(4 * total_bytes, 16 * 1024 * 1024), 64 * 1024 * 1024))

    def full_spec(arr):
        nd = arr.ndim
        return pl.BlockSpec(arr.shape, lambda i, _nd=nd: (0,) * _nd)

    kernel = functools.partial(
        dynamics_kernel, hidden_dim=H, state_dim=S, action_dim=A,
        embed_dim=E, rnn_layers=L)

    out = pl.pallas_call(
        kernel,
        out_shape=jax.ShapeDtypeStruct((T, Bp, OUT), jnp.float32),
        grid_spec=pltpu.PrefetchScalarGridSpec(
            num_scalar_prefetch=0,
            grid=(1,),                       # whole recurrence runs in-kernel
            in_specs=[full_spec(x) for x in kernel_inputs],
            out_specs=pl.BlockSpec((T, Bp, OUT), lambda i: (0, 0, 0)),
            scratch_shapes=[pltpu.VMEM((T, Bp, 3 * H), jnp.float32),
                            pltpu.VMEM((Bp, H), jnp.float32),
                            pltpu.VMEM((Bp, S), jnp.float32)]),
        compiler_params=pltpu.CompilerParams(
            dimension_semantics=("arbitrary",),
            vmem_limit_bytes=vmem_limit),
    )(*kernel_inputs)

    out = jnp.transpose(out[:, :B], (1, 0, 2))   # (B, T, H + 6S), drop batch pad
    h_seq = out[..., 0:H]
    pr_s = out[..., H:H + S]
    po_s = out[..., H + S:H + 2 * S]
    pr_m = out[..., H + 2 * S:H + 3 * S]
    pr_lv = out[..., H + 3 * S:H + 4 * S]
    po_m = out[..., H + 4 * S:H + 5 * S]
    po_lv = out[..., H + 5 * S:H + 6 * S]

    hiddens = jnp.concatenate([prev_hidden[:, None, :], h_seq], axis=1)
    prior_states = jnp.concatenate([prev_state[:, None, :], pr_s], axis=1)
    posterior_states = jnp.concatenate([prev_state[:, None, :], po_s], axis=1)
    return (hiddens, prior_states, posterior_states, pr_m, pr_lv, po_m, po_lv)


def dynamics_predictor_ref(params, prev_hidden, prev_state, actions, observations,
                           dones, eps_prior, eps_post, *, rnn_layers):
    """Pure-JAX reference mirroring the PyTorch forward (for a sanity check)."""
    B, T, _ = actions.shape
    H = prev_hidden.shape[-1]
    S = prev_state.shape[-1]
    h, s_post = prev_hidden, prev_state
    hs, prs, pos, prm, prlv, pom, polv = [prev_hidden[:, None]], [prev_state[:, None]], \
        [prev_state[:, None]], [], [], [], []
    for t in range(T):
        a_t = actions[:, t]
        o_t = observations[:, t]
        st = s_post * (1.0 - dones[:, t])
        sa = jax.nn.elu(st @ params["w_sa_s"] + a_t @ params["w_sa_a"] + params["b_sa"])
        for l in range(rnn_layers):
            gi = sa @ params["w_ih"][l] + params["b_ih"][l]
            gh = h @ params["w_hh"][l] + params["b_hh"][l]
            r = jax.nn.sigmoid(gi[:, :H] + gh[:, :H])
            z = jax.nn.sigmoid(gi[:, H:2 * H] + gh[:, H:2 * H])
            n = jnp.tanh(gi[:, 2 * H:] + r * gh[:, 2 * H:])
            h = (1.0 - z) * n + z * h
        ha = jax.nn.elu(h @ params["w_ha_h"] + a_t @ params["w_ha_a"] + params["b_ha"])
        pp = ha @ params["w_prior"] + params["b_prior"]
        pm, plv = pp[:, :S], pp[:, S:]
        ps = pm + jnp.exp(jax.nn.softplus(plv)) * eps_prior[:, t]
        ho = jax.nn.elu(h @ params["w_ho_h"] + o_t @ params["w_ho_e"] + params["b_ho"])
        qp = ho @ params["w_post"] + params["b_post"]
        qm, qlv = qp[:, :S], qp[:, S:]
        qs = qm + jnp.exp(jax.nn.softplus(qlv)) * eps_post[:, t]
        s_post = qs
        hs.append(h[:, None]); prs.append(ps[:, None]); pos.append(qs[:, None])
        prm.append(pm[:, None]); prlv.append(plv[:, None])
        pom.append(qm[:, None]); polv.append(qlv[:, None])
    cat = lambda xs: jnp.concatenate(xs, axis=1)
    return cat(hs), cat(prs), cat(pos), cat(prm), cat(prlv), cat(pom), cat(polv)


if __name__ == "__main__":
    B, T = 4, 8
    hidden_dim, state_dim, embedding_dim, action_dim = 32, 16, 24, 6
    rnn_layers = 2

    key = jax.random.PRNGKey(0)
    kp, kh, ks, ka, ko, kd, ke1, ke2 = jax.random.split(key, 8)

    params = init_params(kp, hidden_dim, state_dim, embedding_dim, action_dim, rnn_layers)

    prev_hidden = jax.random.normal(kh, (B, hidden_dim), jnp.float32)
    prev_state = jax.random.normal(ks, (B, state_dim), jnp.float32)
    actions = jax.random.normal(ka, (B, T, action_dim), jnp.float32)
    observations = jax.random.normal(ko, (B, T, embedding_dim), jnp.float32)
    dones = (jax.random.uniform(kd, (B, T, 1)) < 0.1).astype(jnp.float32)
    eps_prior = jax.random.normal(ke1, (B, T, state_dim), jnp.float32)
    eps_post = jax.random.normal(ke2, (B, T, state_dim), jnp.float32)

    outs = dynamics_predictor(params, prev_hidden, prev_state, actions, observations,
                              dones, eps_prior, eps_post, rnn_layers=rnn_layers)
    outs = jax.block_until_ready(outs)

    refs = dynamics_predictor_ref(params, prev_hidden, prev_state, actions, observations,
                                  dones, eps_prior, eps_post, rnn_layers=rnn_layers)
    names = ["hiddens", "prior_states", "posterior_states", "prior_means",
             "prior_log_vars", "posterior_means", "posterior_log_vars"]
    for name, o, r in zip(names, outs, refs):
        assert o.shape == r.shape, (name, o.shape, r.shape)
        err = float(jnp.max(jnp.abs(o - r)))
        assert err < 5e-2, f"{name} max abs err {err}"

    print("KERNEL_OK")
</pallas_src>

<mosaic_0001>
module attributes {stable_mosaic.version = 11 : i64} {
  func.func @dynamics_kernel(%arg0: i32, %arg1: memref<8x32xf32, #tpu.memory_space<vmem>>, %arg2: memref<8x16xf32, #tpu.memory_space<vmem>>, %arg3: memref<8x8x63xf32, #tpu.memory_space<vmem>>, %arg4: memref<63x96xf32, #tpu.memory_space<vmem>>, %arg5: memref<1x96xf32, #tpu.memory_space<vmem>>, %arg6: memref<16x32xf32, #tpu.memory_space<vmem>>, %arg7: memref<32x192xf32, #tpu.memory_space<vmem>>, %arg8: memref<1x192xf32, #tpu.memory_space<vmem>>, %arg9: memref<2x32x96xf32, #tpu.memory_space<vmem>>, %arg10: memref<2x1x96xf32, #tpu.memory_space<vmem>>, %arg11: memref<32x64xf32, #tpu.memory_space<vmem>>, %arg12: memref<32x32xf32, #tpu.memory_space<vmem>>, %arg13: memref<1x32xf32, #tpu.memory_space<vmem>>, %arg14: memref<32x32xf32, #tpu.memory_space<vmem>>, %arg15: memref<1x32xf32, #tpu.memory_space<vmem>>, %arg16: memref<8x8x128xf32, #tpu.memory_space<vmem>>, %arg17: memref<8x8x96xf32, #tpu.memory_space<vmem>>, %arg18: memref<8x32xf32, #tpu.memory_space<vmem>>, %arg19: memref<8x16xf32, #tpu.memory_space<vmem>>) attributes {dimension_semantics = [#tpu.dimension_semantics<arbitrary>], iteration_bounds = array<i64: 1>, scalar_prefetch = 0 : i64, scratch_operands = 3 : i64, tpu.core_type = #tpu.core_type<tc>, window_params = [{pipeline_mode = #tpu.pipeline_mode<synchronous>, transform_indices = @transform_0, window_bounds = array<i64: 8, 32>}, {pipeline_mode = #tpu.pipeline_mode<synchronous>, transform_indices = @transform_1, window_bounds = array<i64: 8, 16>}, {pipeline_mode = #tpu.pipeline_mode<synchronous>, transform_indices = @transform_2, window_bounds = array<i64: 8, 8, 63>}, {pipeline_mode = #tpu.pipeline_mode<synchronous>, transform_indices = @transform_3, window_bounds = array<i64: 63, 96>}, {pipeline_mode = #tpu.pipeline_mode<synchronous>, transform_indices = @transform_4, window_bounds = array<i64: 1, 96>}, {pipeline_mode = #tpu.pipeline_mode<synchronous>, transform_indices = @transform_5, window_bounds = array<i64: 16, 32>}, {pipeline_mode = #tpu.pipeline_mode<synchronous>, transform_indices = @transform_6, window_bounds = array<i64: 32, 192>}, {pipeline_mode = #tpu.pipeline_mode<synchronous>, transform_indices = @transform_7, window_bounds = array<i64: 1, 192>}, {pipeline_mode = #tpu.pipeline_mode<synchronous>, transform_indices = @transform_8, window_bounds = array<i64: 2, 32, 96>}, {pipeline_mode = #tpu.pipeline_mode<synchronous>, transform_indices = @transform_9, window_bounds = array<i64: 2, 1, 96>}, {pipeline_mode = #tpu.pipeline_mode<synchronous>, transform_indices = @transform_10, window_bounds = array<i64: 32, 64>}, {pipeline_mode = #tpu.pipeline_mode<synchronous>, transform_indices = @transform_11, window_bounds = array<i64: 32, 32>}, {pipeline_mode = #tpu.pipeline_mode<synchronous>, transform_indices = @transform_12, window_bounds = array<i64: 1, 32>}, {pipeline_mode = #tpu.pipeline_mode<synchronous>, transform_indices = @transform_13, window_bounds = array<i64: 32, 32>}, {pipeline_mode = #tpu.pipeline_mode<synchronous>, transform_indices = @transform_14, window_bounds = array<i64: 1, 32>}, {pipeline_mode = #tpu.pipeline_mode<synchronous>, transform_indices = @transform_15, window_bounds = array<i64: 8, 8, 128>}]} {
    %c0 = arith.constant 0 : index
    %c0_0 = arith.constant 0 : index
    %c0_1 = arith.constant 0 : index
    %0 = vector.load %arg3[%c0, %c0_0, %c0_1] : memref<8x8x63xf32, #tpu.memory_space<vmem>>, vector<8x8x63xf32>
    %1 = vector.shape_cast %0 : vector<8x8x63xf32> to vector<64x63xf32>
    %c0_2 = arith.constant 0 : index
    %c0_3 = arith.constant 0 : index
    %2 = vector.load %arg4[%c0_2, %c0_3] : memref<63x96xf32, #tpu.memory_space<vmem>>, vector<63x96xf32>
    %cst = arith.constant dense<0.000000e+00> : vector<64x96xf32>
    %3 = tpu.matmul %1, %2, %cst {dimension_numbers = #tpu.dot_dimension_numbers<[1], [0], [0], [1], [0, 0, 1, 1], [], []>} : vector<64x63xf32>, vector<63x96xf32>, vector<64x96xf32> -> vector<64x96xf32>
    %c0_4 = arith.constant 0 : index
    %c0_5 = arith.constant 0 : index
    %4 = vector.load %arg5[%c0_4, %c0_5] : memref<1x96xf32, #tpu.memory_space<vmem>>, vector<1x96xf32>
    %5 = vector.broadcast %4 : vector<1x96xf32> to vector<64x96xf32>
    %6 = arith.addf %3, %5 : vector<64x96xf32>
    %7 = vector.shape_cast %6 : vector<64x96xf32> to vector<8x8x96xf32>
    %c0_6 = arith.constant 0 : index
    %c0_7 = arith.constant 0 : index
    %c0_8 = arith.constant 0 : index
    %8 = vector.load %arg17[%c0_6, %c0_7, %c0_8] : memref<8x8x96xf32, #tpu.memory_space<vmem>>, vector<8x8x96xf32>
    tpu.vector_store %arg17[%c0_6, %c0_7, %c0_8], %7 {strides = array<i32>} : memref<8x8x96xf32, #tpu.memory_space<vmem>>, vector<8x8x96xf32>,
    %c0_9 = arith.constant 0 : index
    %c0_10 = arith.constant 0 : index
    %9 = vector.load %arg1[%c0_9, %c0_10] : memref<8x32xf32, #tpu.memory_space<vmem>>, vector<8x32xf32>
    %c0_11 = arith.constant 0 : index
    %c0_12 = arith.constant 0 : index
    %10 = vector.load %arg18[%c0_11, %c0_12] : memref<8x32xf32, #tpu.memory_space<vmem>>, vector<8x32xf32>
    tpu.vector_store %arg18[%c0_11, %c0_12], %9 {strides = array<i32>} : memref<8x32xf32, #tpu.memory_space<vmem>>, vector<8x32xf32>,
    %c0_13 = arith.constant 0 : index
    %c0_14 = arith.constant 0 : index
    %11 = vector.load %arg2[%c0_13, %c0_14] : memref<8x16xf32, #tpu.memory_space<vmem>>, vector<8x16xf32>
    %c0_15 = arith.constant 0 : index
    %c0_16 = arith.constant 0 : index
    %12 = vector.load %arg19[%c0_15, %c0_16] : memref<8x16xf32, #tpu.memory_space<vmem>>, vector<8x16xf32>
    tpu.vector_store %arg19[%c0_15, %c0_16], %11 {strides = array<i32>} : memref<8x16xf32, #tpu.memory_space<vmem>>, vector<8x16xf32>,
    %c0_17 = arith.constant 0 : index
    %c0_18 = arith.constant 0 : index
    %13 = vector.load %arg6[%c0_17, %c0_18] : memref<16x32xf32, #tpu.memory_space<vmem>>, vector<16x32xf32>
    %c0_19 = arith.constant 0 : index
    %c0_20 = arith.constant 0 : index
    %14 = vector.load %arg7[%c0_19, %c0_20] : memref<32x192xf32, #tpu.memory_space<vmem>>, vector<32x192xf32>
    %c0_21 = arith.constant 0 : index
    %c0_22 = arith.constant 0 : index
    %15 = vector.load %arg8[%c0_21, %c0_22] : memref<1x192xf32, #tpu.memory_space<vmem>>, vector<1x192xf32>
    %c0_23 = arith.constant 0 : index
    %c0_24 = arith.constant 0 : index
    %c0_25 = arith.constant 0 : index
    %16 = vector.load %arg9[%c0_23, %c0_24, %c0_25] : memref<2x32x96xf32, #tpu.memory_space<vmem>>, vector<2x32x96xf32>
    %c0_26 = arith.constant 0 : index
    %c0_27 = arith.constant 0 : index
    %c0_28 = arith.constant 0 : index
    %17 = vector.load %arg10[%c0_26, %c0_27, %c0_28] : memref<2x1x96xf32, #tpu.memory_space<vmem>>, vector<2x1x96xf32>
    %c0_29 = arith.constant 0 : index
    %c0_30 = arith.constant 0 : index
    %18 = vector.load %arg11[%c0_29, %c0_30] : memref<32x64xf32, #tpu.memory_space<vmem>>, vector<32x64xf32>
    %c0_31 = arith.constant 0 : index
    %c0_32 = arith.constant 0 : index
    %19 = vector.load %arg12[%c0_31, %c0_32] : memref<32x32xf32, #tpu.memory_space<vmem>>, vector<32x32xf32>
    %c0_33 = arith.constant 0 : index
    %c0_34 = arith.constant 0 : index
    %20 = vector.load %arg13[%c0_33, %c0_34] : memref<1x32xf32, #tpu.memory_space<vmem>>, vector<1x32xf32>
    %c0_35 = arith.constant 0 : index
    %c0_36 = arith.constant 0 : index
    %21 = vector.load %arg14[%c0_35, %c0_36] : memref<32x32xf32, #tpu.memory_space<vmem>>, vector<32x32xf32>
    %c0_37 = arith.constant 0 : index
    %c0_38 = arith.constant 0 : index
    %22 = vector.load %arg15[%c0_37, %c0_38] : memref<1x32xf32, #tpu.memory_space<vmem>>, vector<1x32xf32>
    %c0_i32 = arith.constant 0 : i32
    %c8_i32 = arith.constant 8 : i32
    %23 = arith.addi %c0_i32, %c8_i32 : i32
    %c1_i32 = arith.constant 1 : i32
    scf.for %arg20 = %c0_i32 to %23 step %c1_i32  : i32 {
      %c1_i32_40 = arith.constant 1 : i32
      %24 = arith.muli %arg20, %c1_i32_40 : i32
      %c0_i32_41 = arith.constant 0 : i32
      %25 = arith.addi %c0_i32_41, %24 : i32
      %26 = arith.index_cast %25 : i32 to index
      %c0_42 = arith.constant 0 : index
      %c0_43 = arith.constant 0 : index
      %27 = vector.load %arg3[%26, %c0_42, %c0_43] : memref<8x8x63xf32, #tpu.memory_space<vmem>>, vector<1x8x63xf32>
      %28 = vector.shape_cast %27 : vector<1x8x63xf32> to vector<8x63xf32>
      %29 = arith.index_cast %25 : i32 to index
      %c0_44 = arith.constant 0 : index
      %c0_45 = arith.constant 0 : index
      %30 = vector.load %arg17[%29, %c0_44, %c0_45] : memref<8x8x96xf32, #tpu.memory_space<vmem>>, vector<1x8x96xf32>
      %31 = vector.shape_cast %30 : vector<1x8x96xf32> to vector<8x96xf32>
      %c0_46 = arith.constant 0 : index
      %c0_47 = arith.constant 0 : index
      %32 = vector.load %arg18[%c0_46, %c0_47] : memref<8x32xf32, #tpu.memory_space<vmem>>, vector<8x32xf32>
      %c0_48 = arith.constant 0 : index
      %c0_49 = arith.constant 0 : index
      %33 = vector.load %arg19[%c0_48, %c0_49] : memref<8x16xf32, #tpu.memory_space<vmem>>, vector<8x16xf32>
      %34 = vector.extract_strided_slice %28 {offsets = [0, 30], sizes = [8, 1], strides = [1, 1]} : vector<8x63xf32> to vector<8x1xf32>
      %35 = vector.extract_strided_slice %28 {offsets = [0, 31], sizes = [8, 16], strides = [1, 1]} : vector<8x63xf32> to vector<8x16xf32>
      %36 = vector.extract_strided_slice %28 {offsets = [0, 47], sizes = [8, 16], strides = [1, 1]} : vector<8x63xf32> to vector<8x16xf32>
      %cst_50 = arith.constant 1.000000e+00 : f32
      %37 = vector.broadcast %cst_50 : f32 to vector<8x1xf32>
      %38 = arith.subf %37, %34 : vector<8x1xf32>
      %39 = vector.broadcast %38 : vector<8x1xf32> to vector<8x16xf32>
      %40 = arith.mulf %33, %39 : vector<8x16xf32>
      %cst_51 = arith.constant dense<0.000000e+00> : vector<8x32xf32>
      %41 = tpu.matmul %40, %13, %cst_51 {dimension_numbers = #tpu.dot_dimension_numbers<[1], [0], [0], [1], [0, 0, 1, 1], [], []>} : vector<8x16xf32>, vector<16x32xf32>, vector<8x32xf32> -> vector<8x32xf32>
      %42 = vector.extract_strided_slice %31 {offsets = [0, 0], sizes = [8, 32], strides = [1, 1]} : vector<8x96xf32> to vector<8x32xf32>
      %43 = arith.addf %41, %42 : vector<8x32xf32>
      %cst_52 = arith.constant 0.000000e+00 : f32
      %44 = vector.broadcast %cst_52 : f32 to vector<8x32xf32>
      %45 = arith.cmpf ogt, %43, %44 : vector<8x32xf32>
      %46 = math.exp %43 : vector<8x32xf32>
      %cst_53 = arith.constant 1.000000e+00 : f32
      %47 = vector.broadcast %cst_53 : f32 to vector<8x32xf32>
      %48 = arith.subf %46, %47 : vector<8x32xf32>
      %49 = arith.select %45, %43, %48 : vector<8x32xi1>, vector<8x32xf32>
      %cst_54 = arith.constant dense<0.000000e+00> : vector<8x192xf32>
      %50 = tpu.matmul %49, %14, %cst_54 {dimension_numbers = #tpu.dot_dimension_numbers<[1], [0], [0], [1], [0, 0, 1, 1], [], []>} : vector<8x32xf32>, vector<32x192xf32>, vector<8x192xf32> -> vector<8x192xf32>
      %51 = vector.broadcast %15 : vector<1x192xf32> to vector<8x192xf32>
      %52 = arith.addf %50, %51 : vector<8x192xf32>
      %53 = vector.extract_strided_slice %52 {offsets = [0, 0], sizes = [8, 96], strides = [1, 1]} : vector<8x192xf32> to vector<8x96xf32>
      %54 = vector.extract_strided_slice %16 {offsets = [0, 0, 0], sizes = [1, 32, 96], strides = [1, 1, 1]} : vector<2x32x96xf32> to vector<1x32x96xf32>
      %55 = vector.shape_cast %54 : vector<1x32x96xf32> to vector<32x96xf32>
      %cst_55 = arith.constant dense<0.000000e+00> : vector<8x96xf32>
      %56 = tpu.matmul %32, %55, %cst_55 {dimension_numbers = #tpu.dot_dimension_numbers<[1], [0], [0], [1], [0, 0, 1, 1], [], []>} : vector<8x32xf32>, vector<32x96xf32>, vector<8x96xf32> -> vector<8x96xf32>
      %57 = vector.extract_strided_slice %17 {offsets = [0, 0, 0], sizes = [1, 1, 96], strides = [1, 1, 1]} : vector<2x1x96xf32> to vector<1x1x96xf32>
      %58 = vector.shape_cast %57 : vector<1x1x96xf32> to vector<1x96xf32>
      %59 = vector.broadcast %58 : vector<1x96xf32> to vector<8x96xf32>
      %60 = arith.addf %56, %59 : vector<8x96xf32>
      %61 = vector.extract_strided_slice %53 {offsets = [0, 0], sizes = [8, 32], strides = [1, 1]} : vector<8x96xf32> to vector<8x32xf32>
      %62 = vector.extract_strided_slice %60 {offsets = [0, 0], sizes = [8, 32], strides = [1, 1]} : vector<8x96xf32> to vector<8x32xf32>
      %63 = arith.addf %61, %62 : vector<8x32xf32>
      %64 = arith.negf %63 : vector<8x32xf32>
      %65 = math.exp %64 : vector<8x32xf32>
      %cst_56 = arith.constant 1.000000e+00 : f32
      %66 = vector.broadcast %cst_56 : f32 to vector<8x32xf32>
      %67 = arith.addf %66, %65 : vector<8x32xf32>
      %68 = arith.divf %66, %67 : vector<8x32xf32>
      %69 = vector.extract_strided_slice %53 {offsets = [0, 32], sizes = [8, 32], strides = [1, 1]} : vector<8x96xf32> to vector<8x32xf32>
      %70 = vector.extract_strided_slice %60 {offsets = [0, 32], sizes = [8, 32], strides = [1, 1]} : vector<8x96xf32> to vector<8x32xf32>
      %71 = arith.addf %69, %70 : vector<8x32xf32>
      %72 = arith.negf %71 : vector<8x32xf32>
      %73 = math.exp %72 : vector<8x32xf32>
      %cst_57 = arith.constant 1.000000e+00 : f32
      %74 = vector.broadcast %cst_57 : f32 to vector<8x32xf32>
      %75 = arith.addf %74, %73 : vector<8x32xf32>
      %76 = arith.divf %74, %75 : vector<8x32xf32>
      %77 = vector.extract_strided_slice %53 {offsets = [0, 64], sizes = [8, 32], strides = [1, 1]} : vector<8x96xf32> to vector<8x32xf32>
      %78 = vector.extract_strided_slice %60 {offsets = [0, 64], sizes = [8, 32], strides = [1, 1]} : vector<8x96xf32> to vector<8x32xf32>
      %79 = arith.mulf %68, %78 : vector<8x32xf32>
      %80 = arith.addf %77, %79 : vector<8x32xf32>
      %81 = math.tanh %80 : vector<8x32xf32>
      %cst_58 = arith.constant 1.000000e+00 : f32
      %82 = vector.broadcast %cst_58 : f32 to vector<8x32xf32>
      %83 = arith.subf %82, %76 : vector<8x32xf32>
      %84 = arith.mulf %83, %81 : vector<8x32xf32>
      %85 = arith.mulf %76, %32 : vector<8x32xf32>
      %86 = arith.addf %84, %85 : vector<8x32xf32>
      %87 = vector.extract_strided_slice %52 {offsets = [0, 96], sizes = [8, 96], strides = [1, 1]} : vector<8x192xf32> to vector<8x96xf32>
      %88 = vector.extract_strided_slice %16 {offsets = [1, 0, 0], sizes = [1, 32, 96], strides = [1, 1, 1]} : vector<2x32x96xf32> to vector<1x32x96xf32>
      %89 = vector.shape_cast %88 : vector<1x32x96xf32> to vector<32x96xf32>
      %cst_59 = arith.constant dense<0.000000e+00> : vector<8x96xf32>
      %90 = tpu.matmul %86, %89, %cst_59 {dimension_numbers = #tpu.dot_dimension_numbers<[1], [0], [0], [1], [0, 0, 1, 1], [], []>} : vector<8x32xf32>, vector<32x96xf32>, vector<8x96xf32> -> vector<8x96xf32>
      %91 = vector.extract_strided_slice %17 {offsets = [1, 0, 0], sizes = [1, 1, 96], strides = [1, 1, 1]} : vector<2x1x96xf32> to vector<1x1x96xf32>
      %92 = vector.shape_cast %91 : vector<1x1x96xf32> to vector<1x96xf32>
      %93 = vector.broadcast %92 : vector<1x96xf32> to vector<8x96xf32>
      %94 = arith.addf %90, %93 : vector<8x96xf32>
      %95 = vector.extract_strided_slice %87 {offsets = [0, 0], sizes = [8, 32], strides = [1, 1]} : vector<8x96xf32> to vector<8x32xf32>
      %96 = vector.extract_strided_slice %94 {offsets = [0, 0], sizes = [8, 32], strides = [1, 1]} : vector<8x96xf32> to vector<8x32xf32>
      %97 = arith.addf %95, %96 : vector<8x32xf32>
      %98 = arith.negf %97 : vector<8x32xf32>
      %99 = math.exp %98 : vector<8x32xf32>
      %cst_60 = arith.constant 1.000000e+00 : f32
      %100 = vector.broadcast %cst_60 : f32 to vector<8x32xf32>
      %101 = arith.addf %100, %99 : vector<8x32xf32>
      %102 = arith.divf %100, %101 : vector<8x32xf32>
      %103 = vector.extract_strided_slice %87 {offsets = [0, 32], sizes = [8, 32], strides = [1, 1]} : vector<8x96xf32> to vector<8x32xf32>
      %104 = vector.extract_strided_slice %94 {offsets = [0, 32], sizes = [8, 32], strides = [1, 1]} : vector<8x96xf32> to vector<8x32xf32>
      %105 = arith.addf %103, %104 : vector<8x32xf32>
      %106 = arith.negf %105 : vector<8x32xf32>
      %107 = math.exp %106 : vector<8x32xf32>
      %cst_61 = arith.constant 1.000000e+00 : f32
      %108 = vector.broadcast %cst_61 : f32 to vector<8x32xf32>
      %109 = arith.addf %108, %107 : vector<8x32xf32>
      %110 = arith.divf %108, %109 : vector<8x32xf32>
      %111 = vector.extract_strided_slice %87 {offsets = [0, 64], sizes = [8, 32], strides = [1, 1]} : vector<8x96xf32> to vector<8x32xf32>
      %112 = vector.extract_strided_slice %94 {offsets = [0, 64], sizes = [8, 32], strides = [1, 1]} : vector<8x96xf32> to vector<8x32xf32>
      %113 = arith.mulf %102, %112 : vector<8x32xf32>
      %114 = arith.addf %111, %113 : vector<8x32xf32>
      %115 = math.tanh %114 : vector<8x32xf32>
      %cst_62 = arith.constant 1.000000e+00 : f32
      %116 = vector.broadcast %cst_62 : f32 to vector<8x32xf32>
      %117 = arith.subf %116, %110 : vector<8x32xf32>
      %118 = arith.mulf %117, %115 : vector<8x32xf32>
      %119 = arith.mulf %110, %86 : vector<8x32xf32>
      %120 = arith.addf %118, %119 : vector<8x32xf32>
      %cst_63 = arith.constant dense<0.000000e+00> : vector<8x64xf32>
      %121 = tpu.matmul %120, %18, %cst_63 {dimension_numbers = #tpu.dot_dimension_numbers<[1], [0], [0], [1], [0, 0, 1, 1], [], []>} : vector<8x32xf32>, vector<32x64xf32>, vector<8x64xf32> -> vector<8x64xf32>
      %122 = vector.extract_strided_slice %121 {offsets = [0, 0], sizes = [8, 32], strides = [1, 1]} : vector<8x64xf32> to vector<8x32xf32>
      %123 = vector.extract_strided_slice %31 {offsets = [0, 32], sizes = [8, 32], strides = [1, 1]} : vector<8x96xf32> to vector<8x32xf32>
      %124 = arith.addf %122, %123 : vector<8x32xf32>
      %cst_64 = arith.constant 0.000000e+00 : f32
      %125 = vector.broadcast %cst_64 : f32 to vector<8x32xf32>
      %126 = arith.cmpf ogt, %124, %125 : vector<8x32xf32>
      %127 = math.exp %124 : vector<8x32xf32>
      %cst_65 = arith.constant 1.000000e+00 : f32
      %128 = vector.broadcast %cst_65 : f32 to vector<8x32xf32>
      %129 = arith.subf %127, %128 : vector<8x32xf32>
      %130 = arith.select %126, %124, %129 : vector<8x32xi1>, vector<8x32xf32>
      %131 = vector.extract_strided_slice %121 {offsets = [0, 32], sizes = [8, 32], strides = [1, 1]} : vector<8x64xf32> to vector<8x32xf32>
      %132 = vector.extract_strided_slice %31 {offsets = [0, 64], sizes = [8, 32], strides = [1, 1]} : vector<8x96xf32> to vector<8x32xf32>
      %133 = arith.addf %131, %132 : vector<8x32xf32>
      %cst_66 = arith.constant 0.000000e+00 : f32
      %134 = vector.broadcast %cst_66 : f32 to vector<8x32xf32>
      %135 = arith.cmpf ogt, %133, %134 : vector<8x32xf32>
      %136 = math.exp %133 : vector<8x32xf32>
      %cst_67 = arith.constant 1.000000e+00 : f32
      %137 = vector.broadcast %cst_67 : f32 to vector<8x32xf32>
      %138 = arith.subf %136, %137 : vector<8x32xf32>
      %139 = arith.select %135, %133, %138 : vector<8x32xi1>, vector<8x32xf32>
      %cst_68 = arith.constant dense<0.000000e+00> : vector<8x32xf32>
      %140 = tpu.matmul %130, %19, %cst_68 {dimension_numbers = #tpu.dot_dimension_numbers<[1], [0], [0], [1], [0, 0, 1, 1], [], []>} : vector<8x32xf32>, vector<32x32xf32>, vector<8x32xf32> -> vector<8x32xf32>
      %141 = vector.broadcast %20 : vector<1x32xf32> to vector<8x32xf32>
      %142 = arith.addf %140, %141 : vector<8x32xf32>
      %143 = vector.extract_strided_slice %142 {offsets = [0, 0], sizes = [8, 16], strides = [1, 1]} : vector<8x32xf32> to vector<8x16xf32>
      %144 = vector.extract_strided_slice %142 {offsets = [0, 16], sizes = [8, 16], strides = [1, 1]} : vector<8x32xf32> to vector<8x16xf32>
      %145 = math.exp %144 : vector<8x16xf32>
      %cst_69 = arith.constant 1.000000e+00 : f32
      %146 = vector.broadcast %cst_69 : f32 to vector<8x16xf32>
      %147 = arith.addf %146, %145 : vector<8x16xf32>
      %148 = arith.mulf %147, %35 : vector<8x16xf32>
      %149 = arith.addf %143, %148 : vector<8x16xf32>
      %cst_70 = arith.constant dense<0.000000e+00> : vector<8x32xf32>
      %150 = tpu.matmul %139, %21, %cst_70 {dimension_numbers = #tpu.dot_dimension_numbers<[1], [0], [0], [1], [0, 0, 1, 1], [], []>} : vector<8x32xf32>, vector<32x32xf32>, vector<8x32xf32> -> vector<8x32xf32>
      %151 = vector.broadcast %22 : vector<1x32xf32> to vector<8x32xf32>
      %152 = arith.addf %150, %151 : vector<8x32xf32>
      %153 = vector.extract_strided_slice %152 {offsets = [0, 0], sizes = [8, 16], strides = [1, 1]} : vector<8x32xf32> to vector<8x16xf32>
      %154 = vector.extract_strided_slice %152 {offsets = [0, 16], sizes = [8, 16], strides = [1, 1]} : vector<8x32xf32> to vector<8x16xf32>
      %155 = math.exp %154 : vector<8x16xf32>
      %cst_71 = arith.constant 1.000000e+00 : f32
      %156 = vector.broadcast %cst_71 : f32 to vector<8x16xf32>
      %157 = arith.addf %156, %155 : vector<8x16xf32>
      %158 = arith.mulf %157, %36 : vector<8x16xf32>
      %159 = arith.addf %153, %158 : vector<8x16xf32>
      %c0_72 = arith.constant 0 : index
      %c0_73 = arith.constant 0 : index
      %160 = vector.load %arg18[%c0_72, %c0_73] : memref<8x32xf32, #tpu.memory_space<vmem>>, vector<8x32xf32>
      tpu.vector_store %arg18[%c0_72, %c0_73], %120 {strides = array<i32>} : memref<8x32xf32, #tpu.memory_space<vmem>>, vector<8x32xf32>,
      %c0_74 = arith.constant 0 : index
      %c0_75 = arith.constant 0 : index
      %161 = vector.load %arg19[%c0_74, %c0_75] : memref<8x16xf32, #tpu.memory_space<vmem>>, vector<8x16xf32>
      tpu.vector_store %arg19[%c0_74, %c0_75], %159 {strides = array<i32>} : memref<8x16xf32, #tpu.memory_space<vmem>>, vector<8x16xf32>,
      %162 = tpu.concatenate %120, %149, %159, %142, %152 in 1 : vector<8x32xf32>, vector<8x16xf32>, vector<8x16xf32>, vector<8x32xf32>, vector<8x32xf32> -> vector<8x128xf32>
      %163 = arith.index_cast %25 : i32 to index
      %c0_76 = arith.constant 0 : index
      %c0_77 = arith.constant 0 : index
      %164 = vector.load %arg16[%163, %c0_76, %c0_77] : memref<8x8x128xf32, #tpu.memory_space<vmem>>, vector<1x8x128xf32>
      %165 = vector.shape_cast %164 : vector<1x8x128xf32> to vector<8x128xf32>
      %166 = vector.shape_cast %162 : vector<8x128xf32> to vector<1x8x128xf32>
      tpu.vector_store %arg16[%163, %c0_76, %c0_77], %166 {strides = array<i32>} : memref<8x8x128xf32, #tpu.memory_space<vmem>>, vector<1x8x128xf32>,
    }
    %c8_i32_39 = arith.constant 8 : i32
    return
  }
  func.func @transform_0(%arg0: i32) -> (i32, i32) {
    %c0_i32 = arith.constant 0 : i32
    %c0_i32_0 = arith.constant 0 : i32
    %c0_i32_1 = arith.constant 0 : i32
    return %c0_i32, %c0_i32_0 : i32, i32
  }
  func.func @transform_1(%arg0: i32) -> (i32, i32) {
    %c0_i32 = arith.constant 0 : i32
    %c0_i32_0 = arith.constant 0 : i32
    %c0_i32_1 = arith.constant 0 : i32
    return %c0_i32, %c0_i32_0 : i32, i32
  }
  func.func @transform_2(%arg0: i32) -> (i32, i32, i32) {
    %c0_i32 = arith.constant 0 : i32
    %c0_i32_0 = arith.constant 0 : i32
    %c0_i32_1 = arith.constant 0 : i32
    %c0_i32_2 = arith.constant 0 : i32
    return %c0_i32, %c0_i32_0, %c0_i32_1 : i32, i32, i32
  }
  func.func @transform_3(%arg0: i32) -> (i32, i32) {
    %c0_i32 = arith.constant 0 : i32
    %c0_i32_0 = arith.constant 0 : i32
    %c0_i32_1 = arith.constant 0 : i32
    return %c0_i32, %c0_i32_0 : i32, i32
  }
  func.func @transform_4(%arg0: i32) -> (i32, i32) {
    %c0_i32 = arith.constant 0 : i32
    %c0_i32_0 = arith.constant 0 : i32
    %c0_i32_1 = arith.constant 0 : i32
    return %c0_i32, %c0_i32_0 : i32, i32
  }
  func.func @transform_5(%arg0: i32) -> (i32, i32) {
    %c0_i32 = arith.constant 0 : i32
    %c0_i32_0 = arith.constant 0 : i32
    %c0_i32_1 = arith.constant 0 : i32
    return %c0_i32, %c0_i32_0 : i32, i32
  }
  func.func @transform_6(%arg0: i32) -> (i32, i32) {
    %c0_i32 = arith.constant 0 : i32
    %c0_i32_0 = arith.constant 0 : i32
    %c0_i32_1 = arith.constant 0 : i32
    return %c0_i32, %c0_i32_0 : i32, i32
  }
  func.func @transform_7(%arg0: i32) -> (i32, i32) {
    %c0_i32 = arith.constant 0 : i32
    %c0_i32_0 = arith.constant 0 : i32
    %c0_i32_1 = arith.constant 0 : i32
    return %c0_i32, %c0_i32_0 : i32, i32
  }
  func.func @transform_8(%arg0: i32) -> (i32, i32, i32) {
    %c0_i32 = arith.constant 0 : i32
    %c0_i32_0 = arith.constant 0 : i32
    %c0_i32_1 = arith.constant 0 : i32
    %c0_i32_2 = arith.constant 0 : i32
    return %c0_i32, %c0_i32_0, %c0_i32_1 : i32, i32, i32
  }
  func.func @transform_9(%arg0: i32) -> (i32, i32, i32) {
    %c0_i32 = arith.constant 0 : i32
    %c0_i32_0 = arith.constant 0 : i32
    %c0_i32_1 = arith.constant 0 : i32
    %c0_i32_2 = arith.constant 0 : i32
    return %c0_i32, %c0_i32_0, %c0_i32_1 : i32, i32, i32
  }
  func.func @transform_10(%arg0: i32) -> (i32, i32) {
    %c0_i32 = arith.constant 0 : i32
    %c0_i32_0 = arith.constant 0 : i32
    %c0_i32_1 = arith.constant 0 : i32
    return %c0_i32, %c0_i32_0 : i32, i32
  }
  func.func @transform_11(%arg0: i32) -> (i32, i32) {
    %c0_i32 = arith.constant 0 : i32
    %c0_i32_0 = arith.constant 0 : i32
    %c0_i32_1 = arith.constant 0 : i32
    return %c0_i32, %c0_i32_0 : i32, i32
  }
  func.func @transform_12(%arg0: i32) -> (i32, i32) {
    %c0_i32 = arith.constant 0 : i32
    %c0_i32_0 = arith.constant 0 : i32
    %c0_i32_1 = arith.constant 0 : i32
    return %c0_i32, %c0_i32_0 : i32, i32
  }
  func.func @transform_13(%arg0: i32) -> (i32, i32) {
    %c0_i32 = arith.constant 0 : i32
    %c0_i32_0 = arith.constant 0 : i32
    %c0_i32_1 = arith.constant 0 : i32
    return %c0_i32, %c0_i32_0 : i32, i32
  }
  func.func @transform_14(%arg0: i32) -> (i32, i32) {
    %c0_i32 = arith.constant 0 : i32
    %c0_i32_0 = arith.constant 0 : i32
    %c0_i32_1 = arith.constant 0 : i32
    return %c0_i32, %c0_i32_0 : i32, i32
  }
  func.func @transform_15(%arg0: i32) -> (i32, i32, i32) {
    %c0_i32 = arith.constant 0 : i32
    %c0_i32_0 = arith.constant 0 : i32
    %c0_i32_1 = arith.constant 0 : i32
    %c0_i32_2 = arith.constant 0 : i32
    return %c0_i32, %c0_i32_0, %c0_i32_1 : i32, i32, i32
  }
}

</mosaic_0001>

<llo_original>
// kernel: tpu_custom_call.1
$region0: #{tpu_custom_call.1}
  #allocation0 [shape = 'u32[]', space=smem, size = 0x4, offset = 0x4, fixed_abs, tag = 'smem constant byte address 0x4 - core index']
  #allocation1 [shape = 'u32[144,128]{1,0:T(1,128)}', space=vmem, size = 0x12000, scoped, tag = 'internal scratch']
  #allocation2 [shape = 'f32[8,8,96]{2,1,0:T(8,128)}', space=vmem, size = 0x8000, scoped, tag = 'scratch operand']
  #allocation3 [shape = 'f32[8,32]{1,0:T(8,128)}', space=vmem, size = 0x1000, scoped, tag = 'scratch operand']
  #allocation4 [shape = 'f32[8,16]{1,0:T(8,128)}', space=vmem, size = 0x1000, scoped, tag = 'scratch operand']
  %s0 = inlined_call_operand.hbm [shape: f32[8,32], index: 0, kind: input, shape index: {}]
  %s1 = inlined_call_operand.hbm [shape: f32[8,16], index: 1, kind: input, shape index: {}]
  %s2 = inlined_call_operand.hbm [shape: f32[8,8,63], index: 2, kind: input, shape index: {}]
  %s3 = inlined_call_operand.hbm [shape: f32[63,96], index: 3, kind: input, shape index: {}]
  %s4 = inlined_call_operand.vmem [shape: f32[1,96], index: 4, kind: input, shape index: {}]
  %s5 = inlined_call_operand.hbm [shape: f32[16,32], index: 5, kind: input, shape index: {}]
  %s6 = inlined_call_operand.hbm [shape: f32[32,192], index: 6, kind: input, shape index: {}]
  %s7 = inlined_call_operand.vmem [shape: f32[1,192], index: 7, kind: input, shape index: {}]
  %s8 = inlined_call_operand.hbm [shape: f32[2,32,96], index: 8, kind: input, shape index: {}]
  %s9 = inlined_call_operand.vmem [shape: f32[2,1,96], index: 9, kind: input, shape index: {}]
  %s10 = inlined_call_operand.hbm [shape: f32[32,64], index: 10, kind: input, shape index: {}]
  %s11 = inlined_call_operand.hbm [shape: f32[32,32], index: 11, kind: input, shape index: {}]
  %s12 = inlined_call_operand.vmem [shape: f32[1,32], index: 12, kind: input, shape index: {}]
  %s13 = inlined_call_operand.hbm [shape: f32[32,32], index: 13, kind: input, shape index: {}]
  %s14 = inlined_call_operand.vmem [shape: f32[1,32], index: 14, kind: input, shape index: {}]
  %s15 = inlined_call_operand.hbm [shape: f32[8,8,128], index: 15, kind: output, shape index: {}]
  %s16 = sld [smem:[#allocation0]]
  $region117: #{tpu_custom_call.1} parent=0
    _
  %s18 = ssub.s32 1, %s16
  %s19 = scalar_select 0, %s18, %s16
  $region1: #{tpu_custom_call.1} parent=0
    #allocation5 [shape = 'u8[4096]{0}', space=vmem, size = 0x1000, scoped, tag = 'input window, operand 0, single buffered']
    #allocation6 [shape = 's32[1]{0}', space=sflag, size = 0x4, scoped, tag = 'scoped memory for tpu_custom_call.1']
    #allocation7 [shape = 's32[1]{0}', space=sflag, size = 0x4, scoped, tag = 'scoped memory for tpu_custom_call.1']
    #allocation8 [shape = 'u8[4096]{0}', space=vmem, size = 0x1000, scoped, tag = 'input window, operand 1, single buffered']
    #allocation9 [shape = 's32[1]{0}', space=sflag, size = 0x4, scoped, tag = 'scoped memory for tpu_custom_call.1']
    #allocation10 [shape = 'u8[32768]{0}', space=vmem, size = 0x8000, scoped, tag = 'input window, operand 2, single buffered']
    #allocation11 [shape = 'u8[32768]{0}', space=vmem, size = 0x8000, scoped, tag = 'input window, operand 3, single buffered']
    #allocation12 [shape = 's32[1]{0}', space=sflag, size = 0x4, scoped, tag = 'scoped memory for tpu_custom_call.1']
    #allocation13 [shape = 'u8[8192]{0}', space=vmem, size = 0x2000, scoped, tag = 'input window, operand 5, single buffered']
    #allocation14 [shape = 'u8[32768]{0}', space=vmem, size = 0x8000, scoped, tag = 'input window, operand 6, single buffered']
    #allocation15 [shape = 's32[1]{0}', space=sflag, size = 0x4, scoped, tag = 'scoped memory for tpu_custom_call.1']
    #allocation16 [shape = 'u8[32768]{0}', space=vmem, size = 0x8000, scoped, tag = 'input window, operand 8, single buffered']
    #allocation17 [shape = 'u8[16384]{0}', space=vmem, size = 0x4000, scoped, tag = 'input window, operand 10, single buffered']
    #allocation18 [shape = 's32[1]{0}', space=sflag, size = 0x4, scoped, tag = 'scoped memory for tpu_custom_call.1']
    #allocation19 [shape = 'u8[16384]{0}', space=vmem, size = 0x4000, scoped, tag = 'input window, operand 11, single buffered']
    #allocation20 [shape = 'u8[16384]{0}', space=vmem, size = 0x4000, scoped, tag = 'input window, operand 13, single buffered']
    #allocation21 [shape = 's32[1]{0}', space=sflag, size = 0x4, scoped, tag = 'scoped memory for tpu_custom_call.1']
    #allocation22 [shape = 'u8[32768]{0}', space=vmem, size = 0x8000, scoped, tag = 'output window, operand 0, single buffered']
    %20 = vsyncpa [#allocation6], 0
    %21 = vsyncpa [#allocation9], 0
    %22 = vsyncpa [#allocation12], 0
    %23 = vsyncpa [#allocation15], 0
    %24 = vsyncpa [#allocation18], 0
    %25 = vsyncpa [#allocation21], 0
    %26 = vsyncpa [#allocation7], 0
    // Predicated region
    $region2: #{tpu_custom_call.1} parent=1 // pred_check
      _
    $region3: #{tpu_custom_call.1} parent=1 // pred_check_branch
      %28 = sbr.rel (0) target = $region5
    $region4: #{tpu_custom_call.1} parent=1 // pred_region
      %s30 = ssub.s32 128, 128
      %31 = vsyncadd [#allocation6], %s30
      %s33 = sshll.u32 [#allocation5], 4
      %s34 = int_to_ptr.vmem [resolvable:$true] %s33
      %36 = dma.hbm_to_vmem [thread:$0]  %s0, 128, %s34, [#allocation6]
    $region5: #{tpu_custom_call.1} parent=1 // pred_fallthru
      _
    // Predicated region
    $region6: #{tpu_custom_call.1} parent=1 // pred_check
      _
    $region7: #{tpu_custom_call.1} parent=1 // pred_check_branch
      %38 = sbr.rel (0) target = $region9
    $region8: #{tpu_custom_call.1} parent=1 // pred_region
      %s40 = ssub.s32 128, 128
      %41 = vsyncadd [#allocation9], %s40
      %s43 = sshll.u32 [#allocation8], 4
      %s44 = int_to_ptr.vmem [resolvable:$true] %s43
      %46 = dma.hbm_to_vmem [thread:$0]  %s1, 128, %s44, [#allocation9]
    $region9: #{tpu_custom_call.1} parent=1 // pred_fallthru
      _
    // Predicated region
    $region10: #{tpu_custom_call.1} parent=1 // pred_check
      _
    $region11: #{tpu_custom_call.1} parent=1 // pred_check_branch
      %48 = sbr.rel (0) target = $region13
    $region12: #{tpu_custom_call.1} parent=1 // pred_region
      %s50 = ssub.s32 1024, 1024
      %51 = vsyncadd [#allocation9], %s50
      %s52 = sshll.u32 [#allocation10], 4
      %s53 = int_to_ptr.vmem [resolvable:$true] %s52
      %58 = dma.hbm_to_vmem [thread:$0]  %s2, 1024, %s53, [#allocation9], 128, 128, 8
    $region13: #{tpu_custom_call.1} parent=1 // pred_fallthru
      _
    // Predicated region
    $region14: #{tpu_custom_call.1} parent=1 // pred_check
      _
    $region15: #{tpu_custom_call.1} parent=1 // pred_check_branch
      %60 = sbr.rel (0) target = $region17
    $region16: #{tpu_custom_call.1} parent=1 // pred_region
      %s62 = ssub.s32 1024, 1024
      %63 = vsyncadd [#allocation12], %s62
      %s64 = sshll.u32 [#allocation11], 4
      %s65 = int_to_ptr.vmem [resolvable:$true] %s64
      %70 = dma.hbm_to_vmem [thread:$0]  %s3, 1024, %s65, [#allocation12], 128, 128, 8
    $region17: #{tpu_custom_call.1} parent=1 // pred_fallthru
      _
    // Predicated region
    $region18: #{tpu_custom_call.1} parent=1 // pred_check
      _
    $region19: #{tpu_custom_call.1} parent=1 // pred_check_branch
      %72 = sbr.rel (0) target = $region21
    $region20: #{tpu_custom_call.1} parent=1 // pred_region
      _
    $region21: #{tpu_custom_call.1} parent=1 // pred_fallthru
      _
    // Predicated region
    $region22: #{tpu_custom_call.1} parent=1 // pred_check
      _
    $region23: #{tpu_custom_call.1} parent=1 // pred_check_branch
      %74 = sbr.rel (0) target = $region25
    $region24: #{tpu_custom_call.1} parent=1 // pred_region
      %s76 = ssub.s32 256, 256
      %77 = vsyncadd [#allocation12], %s76
      %s78 = sshll.u32 [#allocation13], 4
      %s79 = int_to_ptr.vmem [resolvable:$true] %s78
      %84 = dma.hbm_to_vmem [thread:$0]  %s5, 256, %s79, [#allocation12], 128, 128, 8
    $region25: #{tpu_custom_call.1} parent=1 // pred_fallthru
      _
    // Predicated region
    $region26: #{tpu_custom_call.1} parent=1 // pred_check
      _
    $region27: #{tpu_custom_call.1} parent=1 // pred_check_branch
      %86 = sbr.rel (0) target = $region29
    $region28: #{tpu_custom_call.1} parent=1 // pred_region
      %s88 = ssub.s32 1024, 1024
      %89 = vsyncadd [#allocation15], %s88
      %s90 = sshll.u32 [#allocation14], 4
      %s91 = int_to_ptr.vmem [resolvable:$true] %s90
      %96 = dma.hbm_to_vmem [thread:$0]  %s6, 1024, %s91, [#allocation15], 256, 256, 16
    $region29: #{tpu_custom_call.1} parent=1 // pred_fallthru
      _
    // Predicated region
    $region30: #{tpu_custom_call.1} parent=1 // pred_check
      _
    $region31: #{tpu_custom_call.1} parent=1 // pred_check_branch
      %98 = sbr.rel (0) target = $region33
    $region32: #{tpu_custom_call.1} parent=1 // pred_region
      _
    $region33: #{tpu_custom_call.1} parent=1 // pred_fallthru
      _
    // Predicated region
    $region34: #{tpu_custom_call.1} parent=1 // pred_check
      _
    $region35: #{tpu_custom_call.1} parent=1 // pred_check_branch
      %100 = sbr.rel (0) target = $region37
    $region36: #{tpu_custom_call.1} parent=1 // pred_region
      %s102 = ssub.s32 1024, 1024
      %103 = vsyncadd [#allocation15], %s102
      %s104 = sshll.u32 [#allocation16], 4
      %s105 = int_to_ptr.vmem [resolvable:$true] %s104
      %110 = dma.hbm_to_vmem [thread:$0]  %s8, 1024, %s105, [#allocation15], 128, 128, 8
    $region37: #{tpu_custom_call.1} parent=1 // pred_fallthru
      _
    // Predicated region
    $region38: #{tpu_custom_call.1} parent=1 // pred_check
      _
    $region39: #{tpu_custom_call.1} parent=1 // pred_check_branch
      %112 = sbr.rel (0) target = $region41
    $region40: #{tpu_custom_call.1} parent=1 // pred_region
      _
    $region41: #{tpu_custom_call.1} parent=1 // pred_fallthru
      _
    // Predicated region
    $region42: #{tpu_custom_call.1} parent=1 // pred_check
      _
    $region43: #{tpu_custom_call.1} parent=1 // pred_check_branch
      %114 = sbr.rel (0) target = $region45
    $region44: #{tpu_custom_call.1} parent=1 // pred_region
      %s116 = ssub.s32 512, 512
      %117 = vsyncadd [#allocation18], %s116
      %s118 = sshll.u32 [#allocation17], 4
      %s119 = int_to_ptr.vmem [resolvable:$true] %s118
      %124 = dma.hbm_to_vmem [thread:$0]  %s10, 512, %s119, [#allocation18], 128, 128, 8
    $region45: #{tpu_custom_call.1} parent=1 // pred_fallthru
      _
    // Predicated region
    $region46: #{tpu_custom_call.1} parent=1 // pred_check
      _
    $region47: #{tpu_custom_call.1} parent=1 // pred_check_branch
      %126 = sbr.rel (0) target = $region49
    $region48: #{tpu_custom_call.1} parent=1 // pred_region
      %s128 = ssub.s32 512, 512
      %129 = vsyncadd [#allocation18], %s128
      %s130 = sshll.u32 [#allocation19], 4
      %s131 = int_to_ptr.vmem [resolvable:$true] %s130
      %136 = dma.hbm_to_vmem [thread:$0]  %s11, 512, %s131, [#allocation18], 128, 128, 8
    $region49: #{tpu_custom_call.1} parent=1 // pred_fallthru
      _
    // Predicated region
    $region50: #{tpu_custom_call.1} parent=1 // pred_check
      _
    $region51: #{tpu_custom_call.1} parent=1 // pred_check_branch
      %138 = sbr.rel (0) target = $region53
    $region52: #{tpu_custom_call.1} parent=1 // pred_region
      _
    $region53: #{tpu_custom_call.1} parent=1 // pred_fallthru
      _
    // Predicated region
    $region54: #{tpu_custom_call.1} parent=1 // pred_check
      _
    $region55: #{tpu_custom_call.1} parent=1 // pred_check_branch
      %140 = sbr.rel (0) target = $region57
    $region56: #{tpu_custom_call.1} parent=1 // pred_region
      %s142 = ssub.s32 512, 512
      %143 = vsyncadd [#allocation21], %s142
      %s144 = sshll.u32 [#allocation20], 4
      %s145 = int_to_ptr.vmem [resolvable:$true] %s144
      %150 = dma.hbm_to_vmem [thread:$0]  %s13, 512, %s145, [#allocation21], 128, 128, 8
    $region57: #{tpu_custom_call.1} parent=1 // pred_fallthru
      _
    // Predicated region
    $region58: #{tpu_custom_call.1} parent=1 // pred_check
      _
    $region59: #{tpu_custom_call.1} parent=1 // pred_check_branch
      %152 = sbr.rel (0) target = $region61
    $region60: #{tpu_custom_call.1} parent=1 // pred_region
      _
    $region61: #{tpu_custom_call.1} parent=1 // pred_fallthru
      _
    // Predicated region
    $region62: #{tpu_custom_call.1} parent=1 // pred_check
      _
    $region63: #{tpu_custom_call.1} parent=1 // pred_check_branch
      %154 = sbr.rel (0) target = $region65
    $region64: #{tpu_custom_call.1} parent=1 // pred_region
      %155 = dma.done [#allocation6], 128
    $region65: #{tpu_custom_call.1} parent=1 // pred_fallthru
      _
    // Predicated region
    $region66: #{tpu_custom_call.1} parent=1 // pred_check
      _
    $region67: #{tpu_custom_call.1} parent=1 // pred_check_branch
      %157 = sbr.rel (0) target = $region69
    $region68: #{tpu_custom_call.1} parent=1 // pred_region
      %158 = dma.done [#allocation9], 128
    $region69: #{tpu_custom_call.1} parent=1 // pred_fallthru
      _
    // Predicated region
    $region70: #{tpu_custom_call.1} parent=1 // pred_check
      _
    $region71: #{tpu_custom_call.1} parent=1 // pred_check_branch
      %160 = sbr.rel (0) target = $region73
    $region72: #{tpu_custom_call.1} parent=1 // pred_region
      %161 = dma.done [#allocation9], 1024
    $region73: #{tpu_custom_call.1} parent=1 // pred_fallthru
      _
    // Predicated region
    $region74: #{tpu_custom_call.1} parent=1 // pred_check
      _
    $region75: #{tpu_custom_call.1} parent=1 // pred_check_branch
      %163 = sbr.rel (0) target = $region77
    $region76: #{tpu_custom_call.1} parent=1 // pred_region
      %164 = dma.done [#allocation12], 1024
    $region77: #{tpu_custom_call.1} parent=1 // pred_fallthru
      _
    // Predicated region
    $region78: #{tpu_custom_call.1} parent=1 // pred_check
      _
    $region79: #{tpu_custom_call.1} parent=1 // pred_check_branch
      %166 = sbr.rel (0) target = $region81
    $region80: #{tpu_custom_call.1} parent=1 // pred_region
      %167 = dma.done [#allocation12], 256
    $region81: #{tpu_custom_call.1} parent=1 // pred_fallthru
      _
    // Predicated region
    $region82: #{tpu_custom_call.1} parent=1 // pred_check
      _
    $region83: #{tpu_custom_call.1} parent=1 // pred_check_branch
      %169 = sbr.rel (0) target = $region85
    $region84: #{tpu_custom_call.1} parent=1 // pred_region
      %170 = dma.done [#allocation15], 1024
    $region85: #{tpu_custom_call.1} parent=1 // pred_fallthru
      _
    // Predicated region
    $region86: #{tpu_custom_call.1} parent=1 // pred_check
      _
    $region87: #{tpu_custom_call.1} parent=1 // pred_check_branch
      %172 = sbr.rel (0) target = $region89
    $region88: #{tpu_custom_call.1} parent=1 // pred_region
      %173 = dma.done [#allocation15], 1024
    $region89: #{tpu_custom_call.1} parent=1 // pred_fallthru
      _
    // Predicated region
    $region90: #{tpu_custom_call.1} parent=1 // pred_check
      _
    $region91: #{tpu_custom_call.1} parent=1 // pred_check_branch
      %175 = sbr.rel (0) target = $region93
    $region92: #{tpu_custom_call.1} parent=1 // pred_region
      %176 = dma.done [#allocation18], 512
    $region93: #{tpu_custom_call.1} parent=1 // pred_fallthru
      _
    // Predicated region
    $region94: #{tpu_custom_call.1} parent=1 // pred_check
      _
    $region95: #{tpu_custom_call.1} parent=1 // pred_check_branch
      %178 = sbr.rel (0) target = $region97
    $region96: #{tpu_custom_call.1} parent=1 // pred_region
      %179 = dma.done [#allocation18], 512
    $region97: #{tpu_custom_call.1} parent=1 // pred_fallthru
      _
    // Predicated region
    $region98: #{tpu_custom_call.1} parent=1 // pred_check
      _
    $region99: #{tpu_custom_call.1} parent=1 // pred_check_branch
      %181 = sbr.rel (0) target = $region101
    $region100: #{tpu_custom_call.1} parent=1 // pred_region
      %182 = dma.done [#allocation21], 512
    $region101: #{tpu_custom_call.1} parent=1 // pred_fallthru
      _
    %v183 = vld [vmem:[#allocation10] sm:$0xff]
    %v184 = vld [vmem:[#allocation10 + $0x8] sm:$0xff]
    %v185 = vld [vmem:[#allocation10 + $0x10] sm:$0xff]
    %v186 = vld [vmem:[#allocation10 + $0x18] sm:$0xff]
    %v187 = vld [vmem:[#allocation10 + $0x20] sm:$0xff]
    %v188 = vld [vmem:[#allocation10 + $0x28] sm:$0xff]
    %v189 = vld [vmem:[#allocation10 + $0x30] sm:$0xff]
    %v190 = vld [vmem:[#allocation10 + $0x38] sm:$0xff]
    %v191 = vld [vmem:[#allocation11] sm:$0xff]
    %v192 = vld [vmem:[#allocation11 + $0x8] sm:$0xff]
    %v193 = vld [vmem:[#allocation11 + $0x10] sm:$0xff]
    %v194 = vld [vmem:[#allocation11 + $0x18] sm:$0xff]
    %v195 = vld [vmem:[#allocation11 + $0x20] sm:$0xff]
    %v196 = vld [vmem:[#allocation11 + $0x28] sm:$0xff]
    %v197 = vld [vmem:[#allocation11 + $0x30] sm:$0xff]
    %v198 = vld [vmem:[#allocation11 + $0x38] sm:$0x7f]
    %v199 = vld [vmem:[%s4] sm:$0x1]
    %v201 = vlaneseq
    %v202 = vshrl.u32 %v201, 7
    %v203 = vsub.s32 0, %v202
    %v204 = vrot.slane %v199, %v203
    %vm206 = vcmask 515072
    %v208 = vsel %vm206, %v183, 0
    %v211 = vsel %vm206, %v184, 0
    %v214 = vsel %vm206, %v185, 0
    %v217 = vsel %vm206, %v186, 0
    %v220 = vsel %vm206, %v187, 0
    %v223 = vsel %vm206, %v188, 0
    %v226 = vsel %vm206, %v189, 0
    %v229 = vsel %vm206, %v190, 0
    %vm231 = vcmask 1046528
    %v233 = vsel %vm231, %v198, 0
    %235 = vmatprep.subr.mxu0 0.0
    %236 = vmatpush1.msra.mxu0 0.0
    %237 = vmatprep.subr.mxu0 0.0
    %238 = vmatpush1.msra.mxu0 0.0
    %239 = vmatprep.subr.mxu0 0.0
    %240 = vmatpush1.msra.mxu0 0.0
    %241 = vmatprep.subr.mxu0 0.0
    %242 = vmatpush1.msra.mxu0 0.0
    %243 = vmatprep.subr.mxu0 0.0
    %244 = vmatpush1.msra.mxu0 0.0
    %245 = vmatprep.subr.mxu0 0.0
    %246 = vmatpush1.msra.mxu0 0.0
    %247 = vmatprep.subr.mxu0 0.0
    %248 = vmatpush1.msra.mxu0 0.0
    %249 = vmatprep.subr.mxu0 0.0
    %250 = vmatpush1.msra.mxu0 0.0
    %251 = vmatprep.subr.mxu0 0.0
    %252 = vmatpush1.msra.mxu0 %v233
    %253 = vmatprep.subr.mxu0 0.0
    %254 = vmatpush1.msra.mxu0 %v197
    %255 = vmatprep.subr.mxu0 0.0
    %256 = vmatpush1.msra.mxu0 %v196
    %257 = vmatprep.subr.mxu0 0.0
    %258 = vmatpush1.msra.mxu0 %v195
    %259 = vmatprep.subr.mxu0 0.0
    %260 = vmatpush1.msra.mxu0 %v194
    %261 = vmatprep.subr.mxu0 0.0
    %262 = vmatpush1.msra.mxu0 %v193
    %263 = vmatprep.subr.mxu0 0.0
    %264 = vmatpush1.msra.mxu0 %v192
    %265 = vmatprep.subr.mxu0 0.0
    %266 = vmatpush1.msra.mxu0 %v191
    %267 = vmatprep.subr.mxu0 0.0
    %268 = vmatpush2.msra.mxu0 0.0
    %269 = vmatprep.subr.mxu0 0.0
    %270 = vmatpush2.msra.mxu0 0.0
    %271 = vmatprep.subr.mxu0 0.0
    %272 = vmatpush2.msra.mxu0 0.0
    %273 = vmatprep.subr.mxu0 0.0
    %274 = vmatpush2.msra.mxu0 0.0
    %275 = vmatprep.subr.mxu0 0.0
    %276 = vmatpush2.msra.mxu0 0.0
    %277 = vmatprep.subr.mxu0 0.0
    %278 = vmatpush2.msra.mxu0 0.0
    %279 = vmatprep.subr.mxu0 0.0
    %280 = vmatpush2.msra.mxu0 0.0
    %281 = vmatprep.subr.mxu0 0.0
    %282 = vmatpush2.msra.mxu0 0.0
    %283 = vmatprep.subr.mxu0 0.0
    %284 = vmatpush2.msra.mxu0 0.0
    %285 = vmatprep.subr.mxu0 0.0
    %286 = vmatpush2.msra.mxu0 0.0
    %287 = vmatprep.subr.mxu0 0.0
    %288 = vmatpush2.msra.mxu0 0.0
    %289 = vmatprep.subr.mxu0 0.0
    %290 = vmatpush2.msra.mxu0 0.0
    %291 = vmatprep.subr.mxu0 0.0
    %292 = vmatpush2.msra.mxu0 0.0
    %293 = vmatprep.subr.mxu0 0.0
    %294 = vmatpush2.msra.mxu0 0.0
    %295 = vmatprep.subr.mxu0 0.0
    %296 = vmatpush2.msra.mxu0 0.0
    %297 = vmatprep.subr.mxu0 0.0
    %298 = vmatpush2.msra.mxu0 0.0
    %299 = vmatprep.mubr.f32.mxu0 0.0
    %300 = vmatmul.mubr.f32.gmra.mxu0 %v208
    %v301 = vpop.f32.mrf.mxu0
    %v302 = vadd.f32 %v204, %v301
    %v303 = vpop.f32.mrf.mxu0
    %304 = vmatprep.mubr.f32.mxu0 0.0
    %305 = vmatmul.mubr.f32.gmra.mxu0 %v211
    %v306 = vpop.f32.mrf.mxu0
    %v307 = vadd.f32 %v204, %v306
    %v308 = vpop.f32.mrf.mxu0
    %309 = vmatprep.mubr.f32.mxu0 0.0
    %310 = vmatmul.mubr.f32.gmra.mxu0 %v214
    %v311 = vpop.f32.mrf.mxu0
    %v312 = vadd.f32 %v204, %v311
    %v313 = vpop.f32.mrf.mxu0
    %314 = vmatprep.mubr.f32.mxu0 0.0
    %315 = vmatmul.mubr.f32.gmra.mxu0 %v217
    %v316 = vpop.f32.mrf.mxu0
    %v317 = vadd.f32 %v204, %v316
    %v318 = vpop.f32.mrf.mxu0
    %319 = vmatprep.mubr.f32.mxu0 0.0
    %320 = vmatmul.mubr.f32.gmra.mxu0 %v220
    %v321 = vpop.f32.mrf.mxu0
    %v322 = vadd.f32 %v204, %v321
    %v323 = vpop.f32.mrf.mxu0
    %324 = vmatprep.mubr.f32.mxu0 0.0
    %325 = vmatmul.mubr.f32.gmra.mxu0 %v223
    %v326 = vpop.f32.mrf.mxu0
    %v327 = vadd.f32 %v204, %v326
    %v328 = vpop.f32.mrf.mxu0
    %329 = vmatprep.mubr.f32.mxu0 0.0
    %330 = vmatmul.mubr.f32.gmra.mxu0 %v226
    %v331 = vpop.f32.mrf.mxu0
    %v332 = vadd.f32 %v204, %v331
    %v333 = vpop.f32.mrf.mxu0
    %334 = vmatprep.mubr.f32.mxu0 0.0
    %335 = vmatmul.mubr.f32.gmra.mxu0 %v229
    %v336 = vpop.f32.mrf.mxu0
    %v337 = vadd.f32 %v204, %v336
    %v338 = vpop.f32.mrf.mxu0
    %339 = vdwg.mxu0
    %vm340 = vcmask 785408
    %341 = vst.msk [vmem:[#allocation2] sm:$0xff] %vm340, %v302
    %342 = vst.msk [vmem:[#allocation2 + $0x8] sm:$0xff] %vm340, %v307
    %343 = vst.msk [vmem:[#allocation2 + $0x10] sm:$0xff] %vm340, %v312
    %344 = vst.msk [vmem:[#allocation2 + $0x18] sm:$0xff] %vm340, %v317
    %345 = vst.msk [vmem:[#allocation2 + $0x20] sm:$0xff] %vm340, %v322
    %346 = vst.msk [vmem:[#allocation2 + $0x28] sm:$0xff] %vm340, %v327
    %347 = vst.msk [vmem:[#allocation2 + $0x30] sm:$0xff] %vm340, %v332
    %348 = vst.msk [vmem:[#allocation2 + $0x38] sm:$0xff] %vm340, %v337
    %v349 = vld [vmem:[#allocation5] sm:$0xff]
    %vm350 = vcmask 261120
    %351 = vst.msk [vmem:[#allocation3] sm:$0xff] %vm350, %v349
    %v352 = vld [vmem:[#allocation8] sm:$0xff]
    %vm353 = vcmask 130048
    %354 = vst.msk [vmem:[#allocation4] sm:$0xff] %vm353, %v352
    %v355 = vld [vmem:[#allocation13] sm:$0xff]
    %v356 = vld [vmem:[#allocation13 + $0x8] sm:$0xff]
    %v357 = vld [vmem:[#allocation14] sm:$0xff]
    %v358 = vld [vmem:[#allocation14 + $0x8] sm:$0xff]
    %v359 = vld [vmem:[#allocation14 + $0x10] sm:$0xff]
    %v360 = vld [vmem:[#allocation14 + $0x18] sm:$0xff]
    %v361 = vld [vmem:[#allocation14 + $0x20] sm:$0xff]
    %v362 = vld [vmem:[#allocation14 + $0x28] sm:$0xff]
    %v363 = vld [vmem:[#allocation14 + $0x30] sm:$0xff]
    %v364 = vld [vmem:[#allocation14 + $0x38] sm:$0xff]
    %v365 = vld [vmem:[%s7] sm:$0x3]
    %v366 = vld [vmem:[#allocation16] sm:$0xff]
    %v367 = vld [vmem:[#allocation16 + $0x8] sm:$0xff]
    %v368 = vld [vmem:[#allocation16 + $0x10] sm:$0xff]
    %v369 = vld [vmem:[#allocation16 + $0x18] sm:$0xff]
    %v370 = vld [vmem:[#allocation16 + $0x20] sm:$0xff]
    %v371 = vld [vmem:[#allocation16 + $0x28] sm:$0xff]
    %v372 = vld [vmem:[#allocation16 + $0x30] sm:$0xff]
    %v373 = vld [vmem:[#allocation16 + $0x38] sm:$0xff]
    %v374 = vld [vmem:[%s9] sm:$0x1]
    %v375 = vld [vmem:[%s9 + $0x1] sm:$0x1]
    %v376 = vld [vmem:[#allocation17] sm:$0xff]
    %v377 = vld [vmem:[#allocation17 + $0x8] sm:$0xff]
    %v378 = vld [vmem:[#allocation17 + $0x10] sm:$0xff]
    %v379 = vld [vmem:[#allocation17 + $0x18] sm:$0xff]
    %v380 = vld [vmem:[#allocation19] sm:$0xff]
    %v381 = vld [vmem:[#allocation19 + $0x8] sm:$0xff]
    %v382 = vld [vmem:[#allocation19 + $0x10] sm:$0xff]
    %v383 = vld [vmem:[#allocation19 + $0x18] sm:$0xff]
    %v384 = vld [vmem:[%s12] sm:$0x1]
    %v385 = vld [vmem:[#allocation20] sm:$0xff]
    %v386 = vld [vmem:[#allocation20 + $0x8] sm:$0xff]
    %v387 = vld [vmem:[#allocation20 + $0x10] sm:$0xff]
    %v388 = vld [vmem:[#allocation20 + $0x18] sm:$0xff]
    %v389 = vld [vmem:[%s14] sm:$0x1]
    loop: start=0, step=1, limit=8
    $region102: #{tpu_custom_call.1} parent=1 // loop_pre_header
      _
    $region103: #{tpu_custom_call.1} parent=1 // loop_header
      %s391 = sphi 0, %s395
      %p392 = scmp.ge.s32.totalorder %s391, 8
    $region104: #{tpu_custom_call.1} parent=1 // loop_header_branch
      %394 = sbr.rel (%p392) target = $region108
    $region105: #{tpu_custom_call.1} parent=1 // loop_body
      %s396 = smul.u32 %s391, 8
      %s397 = scalar_lea.vmem [#allocation10], %s396
      %v398 = vld [vmem:[%s397] sm:$0xff]
      %s399 = scalar_lea.vmem [#allocation2], %s396
      %v400 = vld [vmem:[%s399] sm:$0xff]
      %v401 = vld [vmem:[#allocation3] sm:$0xff]
      %v402 = vld [vmem:[#allocation4] sm:$0xff]
      %v403 = vsub.f32 1.0, %v398
      %405 = vset.pattern.permute.xlu0 30
      %406 = vperm.xlu0 %405, %v403
      %v407 = vpop.permute.xlu0 %406
      %v409 = vmul.f32 %v402, %v407
      %v411 = vsel %vm353, %v409, 0
      %413 = vmatprep.subr.mxu0 0.0
      %414 = vmatpush1.msra.mxu0 0.0
      %415 = vmatprep.subr.mxu0 0.0
      %416 = vmatpush1.msra.mxu0 0.0
      %417 = vmatprep.subr.mxu0 0.0
      %418 = vmatpush1.msra.mxu0 0.0
      %419 = vmatprep.subr.mxu0 0.0
      %420 = vmatpush1.msra.mxu0 0.0
      %421 = vmatprep.subr.mxu0 0.0
      %422 = vmatpush1.msra.mxu0 0.0
      %423 = vmatprep.subr.mxu0 0.0
      %424 = vmatpush1.msra.mxu0 0.0
      %425 = vmatprep.subr.mxu0 0.0
      %426 = vmatpush1.msra.mxu0 0.0
      %427 = vmatprep.subr.mxu0 0.0
      %428 = vmatpush1.msra.mxu0 0.0
      %429 = vmatprep.subr.mxu0 0.0
      %430 = vmatpush1.msra.mxu0 0.0
      %431 = vmatprep.subr.mxu0 0.0
      %432 = vmatpush1.msra.mxu0 0.0
      %433 = vmatprep.subr.mxu0 0.0
      %434 = vmatpush1.msra.mxu0 0.0
      %435 = vmatprep.subr.mxu0 0.0
      %436 = vmatpush1.msra.mxu0 0.0
      %437 = vmatprep.subr.mxu0 0.0
      %438 = vmatpush1.msra.mxu0 0.0
      %439 = vmatprep.subr.mxu0 0.0
      %440 = vmatpush1.msra.mxu0 0.0
      %441 = vmatprep.subr.mxu0 0.0
      %442 = vmatpush1.msra.mxu0 %v356
      %443 = vmatprep.subr.mxu0 0.0
      %444 = vmatpush1.msra.mxu0 %v355
      %445 = vmatprep.subr.mxu0 0.0
      %446 = vmatpush2.msra.mxu0 0.0
      %447 = vmatprep.subr.mxu0 0.0
      %448 = vmatpush2.msra.mxu0 0.0
      %449 = vmatprep.subr.mxu0 0.0
      %450 = vmatpush2.msra.mxu0 0.0
      %451 = vmatprep.subr.mxu0 0.0
      %452 = vmatpush2.msra.mxu0 0.0
      %453 = vmatprep.subr.mxu0 0.0
      %454 = vmatpush2.msra.mxu0 0.0
      %455 = vmatprep.subr.mxu0 0.0
      %456 = vmatpush2.msra.mxu0 0.0
      %457 = vmatprep.subr.mxu0 0.0
      %458 = vmatpush2.msra.mxu0 0.0
      %459 = vmatprep.subr.mxu0 0.0
      %460 = vmatpush2.msra.mxu0 0.0
      %461 = vmatprep.subr.mxu0 0.0
      %462 = vmatpush2.msra.mxu0 0.0
      %463 = vmatprep.subr.mxu0 0.0
      %464 = vmatpush2.msra.mxu0 0.0
      %465 = vmatprep.subr.mxu0 0.0
      %466 = vmatpush2.msra.mxu0 0.0
      %467 = vmatprep.subr.mxu0 0.0
      %468 = vmatpush2.msra.mxu0 0.0
      %469 = vmatprep.subr.mxu0 0.0
      %470 = vmatpush2.msra.mxu0 0.0
      %471 = vmatprep.subr.mxu0 0.0
      %472 = vmatpush2.msra.mxu0 0.0
      %473 = vmatprep.subr.mxu0 0.0
      %474 = vmatpush2.msra.mxu0 0.0
      %475 = vmatprep.subr.mxu0 0.0
      %476 = vmatpush2.msra.mxu0 0.0
      %477 = vmatprep.mubr.f32.mxu0 0.0
      %478 = vmatmul.mubr.f32.gmra.mxu0 %v411
      %v479 = vpop.f32.mrf.mxu0
      %v480 = vadd.f32 %v400, %v479
      %v481 = vpop.f32.mrf.mxu0
      %482 = vdwg.mxu0
      %vm483 = vcmp.gt.f32.partialorder %v480, 0.0
      %v484 = vmul.f32 %v480, 1.442695
      %v485 = vpow.pop %v484
      %v486 = vsub.f32 %v485, 1.0
      %v487 = vsel %vm483, %v480, %v486
      %v489 = vlaneseq
      %v490 = vshrl.u32 %v489, 7
      %v491 = vsub.s32 0, %v490
      %v492 = vrot.slane %v365, %v491
      %v493 = vlaneseq
      %v494 = vshrl.u32 %v493, 7
      %v495 = vsub.s32 1, %v494
      %v496 = vrot.slane %v365, %v495
      %v500 = vsel %vm350, %v487, 0
      %502 = vmatprep.subr.mxu0 0.0
      %503 = vmatpush1.msra.mxu0 0.0
      %504 = vmatprep.subr.mxu0 0.0
      %505 = vmatpush1.msra.mxu0 0.0
      %506 = vmatprep.subr.mxu0 0.0
      %507 = vmatpush1.msra.mxu0 0.0
      %508 = vmatprep.subr.mxu0 0.0
      %509 = vmatpush1.msra.mxu0 0.0
      %510 = vmatprep.subr.mxu0 0.0
      %511 = vmatpush1.msra.mxu0 0.0
      %512 = vmatprep.subr.mxu0 0.0
      %513 = vmatpush1.msra.mxu0 0.0
      %514 = vmatprep.subr.mxu0 0.0
      %515 = vmatpush1.msra.mxu0 0.0
      %516 = vmatprep.subr.mxu0 0.0
      %517 = vmatpush1.msra.mxu0 0.0
      %518 = vmatprep.subr.mxu0 0.0
      %519 = vmatpush1.msra.mxu0 0.0
      %520 = vmatprep.subr.mxu0 0.0
      %521 = vmatpush1.msra.mxu0 0.0
      %522 = vmatprep.subr.mxu0 0.0
      %523 = vmatpush1.msra.mxu0 0.0
      %524 = vmatprep.subr.mxu0 0.0
      %525 = vmatpush1.msra.mxu0 0.0
      %526 = vmatprep.subr.mxu0 %v364
      %527 = vmatpush1.msra.mxu0 %v363
      %528 = vmatprep.subr.mxu0 %v362
      %529 = vmatpush1.msra.mxu0 %v361
      %530 = vmatprep.subr.mxu0 %v360
      %531 = vmatpush1.msra.mxu0 %v359
      %532 = vmatprep.subr.mxu0 %v358
      %533 = vmatpush1.msra.mxu0 %v357
      %534 = vmatprep.subr.mxu0 0.0
      %535 = vmatpush2.msra.mxu0 0.0
      %536 = vmatprep.subr.mxu0 0.0
      %537 = vmatpush2.msra.mxu0 0.0
      %538 = vmatprep.subr.mxu0 0.0
      %539 = vmatpush2.msra.mxu0 0.0
      %540 = vmatprep.subr.mxu0 0.0
      %541 = vmatpush2.msra.mxu0 0.0
      %542 = vmatprep.subr.mxu0 0.0
      %543 = vmatpush2.msra.mxu0 0.0
      %544 = vmatprep.subr.mxu0 0.0
      %545 = vmatpush2.msra.mxu0 0.0
      %546 = vmatprep.subr.mxu0 0.0
      %547 = vmatpush2.msra.mxu0 0.0
      %548 = vmatprep.subr.mxu0 0.0
      %549 = vmatpush2.msra.mxu0 0.0
      %550 = vmatprep.subr.mxu0 0.0
      %551 = vmatpush2.msra.mxu0 0.0
      %552 = vmatprep.subr.mxu0 0.0
      %553 = vmatpush2.msra.mxu0 0.0
      %554 = vmatprep.subr.mxu0 0.0
      %555 = vmatpush2.msra.mxu0 0.0
      %556 = vmatprep.subr.mxu0 0.0
      %557 = vmatpush2.msra.mxu0 0.0
      %558 = vmatprep.subr.mxu0 0.0
      %559 = vmatpush2.msra.mxu0 0.0
      %560 = vmatprep.subr.mxu0 0.0
      %561 = vmatpush2.msra.mxu0 0.0
      %562 = vmatprep.subr.mxu0 0.0
      %563 = vmatpush2.msra.mxu0 0.0
      %564 = vmatprep.subr.mxu0 0.0
      %565 = vmatpush2.msra.mxu0 0.0
      %566 = vmatprep.mubr.f32.mxu0 0.0
      %567 = vmatmul.mubr.f32.gmra.mxu0 %v500
      %v568 = vpop.f32.mrf.mxu0
      %v569 = vadd.f32 %v492, %v568
      %v570 = vpop.f32.mrf.mxu0
      %v571 = vadd.f32 %v496, %v570
      %572 = vdwg.mxu0
      %v574 = vlaneseq
      %v575 = vshrl.u32 %v574, 7
      %v576 = vsub.s32 0, %v575
      %v577 = vrot.slane %v374, %v576
      %v580 = vsel %vm350, %v401, 0
      %582 = vmatprep.subr.mxu0 0.0
      %583 = vmatpush1.msra.mxu0 0.0
      %584 = vmatprep.subr.mxu0 0.0
      %585 = vmatpush1.msra.mxu0 0.0
      %586 = vmatprep.subr.mxu0 0.0
      %587 = vmatpush1.msra.mxu0 0.0
      %588 = vmatprep.subr.mxu0 0.0
      %589 = vmatpush1.msra.mxu0 0.0
      %590 = vmatprep.subr.mxu0 0.0
      %591 = vmatpush1.msra.mxu0 0.0
      %592 = vmatprep.subr.mxu0 0.0
      %593 = vmatpush1.msra.mxu0 0.0
      %594 = vmatprep.subr.mxu0 0.0
      %595 = vmatpush1.msra.mxu0 0.0
      %596 = vmatprep.subr.mxu0 0.0
      %597 = vmatpush1.msra.mxu0 0.0
      %598 = vmatprep.subr.mxu0 0.0
      %599 = vmatpush1.msra.mxu0 0.0
      %600 = vmatprep.subr.mxu0 0.0
      %601 = vmatpush1.msra.mxu0 0.0
      %602 = vmatprep.subr.mxu0 0.0
      %603 = vmatpush1.msra.mxu0 0.0
      %604 = vmatprep.subr.mxu0 0.0
      %605 = vmatpush1.msra.mxu0 0.0
      %606 = vmatprep.subr.mxu0 0.0
      %607 = vmatpush1.msra.mxu0 %v369
      %608 = vmatprep.subr.mxu0 0.0
      %609 = vmatpush1.msra.mxu0 %v368
      %610 = vmatprep.subr.mxu0 0.0
      %611 = vmatpush1.msra.mxu0 %v367
      %612 = vmatprep.subr.mxu0 0.0
      %613 = vmatpush1.msra.mxu0 %v366
      %614 = vmatprep.subr.mxu0 0.0
      %615 = vmatpush2.msra.mxu0 0.0
      %616 = vmatprep.subr.mxu0 0.0
      %617 = vmatpush2.msra.mxu0 0.0
      %618 = vmatprep.subr.mxu0 0.0
      %619 = vmatpush2.msra.mxu0 0.0
      %620 = vmatprep.subr.mxu0 0.0
      %621 = vmatpush2.msra.mxu0 0.0
      %622 = vmatprep.subr.mxu0 0.0
      %623 = vmatpush2.msra.mxu0 0.0
      %624 = vmatprep.subr.mxu0 0.0
      %625 = vmatpush2.msra.mxu0 0.0
      %626 = vmatprep.subr.mxu0 0.0
      %627 = vmatpush2.msra.mxu0 0.0
      %628 = vmatprep.subr.mxu0 0.0
      %629 = vmatpush2.msra.mxu0 0.0
      %630 = vmatprep.subr.mxu0 0.0
      %631 = vmatpush2.msra.mxu0 0.0
      %632 = vmatprep.subr.mxu0 0.0
      %633 = vmatpush2.msra.mxu0 0.0
      %634 = vmatprep.subr.mxu0 0.0
      %635 = vmatpush2.msra.mxu0 0.0
      %636 = vmatprep.subr.mxu0 0.0
      %637 = vmatpush2.msra.mxu0 0.0
      %638 = vmatprep.subr.mxu0 0.0
      %639 = vmatpush2.msra.mxu0 0.0
      %640 = vmatprep.subr.mxu0 0.0
      %641 = vmatpush2.msra.mxu0 0.0
      %642 = vmatprep.subr.mxu0 0.0
      %643 = vmatpush2.msra.mxu0 0.0
      %644 = vmatprep.subr.mxu0 0.0
      %645 = vmatpush2.msra.mxu0 0.0
      %646 = vmatprep.mubr.f32.mxu0 0.0
      %647 = vmatmul.mubr.f32.gmra.mxu0 %v580
      %v648 = vpop.f32.mrf.mxu0
      %v649 = vadd.f32 %v577, %v648
      %v650 = vpop.f32.mrf.mxu0
      %651 = vdwg.mxu0
      %v652 = vadd.f32 %v569, %v649
      %v653 = vxor.u32 %v652, 2147483648
      %v654 = vmul.f32 %v653, 1.442695
      %v655 = vpow.pop %v654
      %v656 = vadd.f32 %v655, 1.0
      %v657 = vrcp.pop %v656
      %v658 = vmul.f32 1.0, %v657
      %660 = vrot.lane.b32.xlu0 %v649, 64
      %v661 = vpop.permute.xlu0 %660
      %v663 = vmul.f32 %v658, %v661
      %665 = vrot.lane.b32.xlu0 %v663, 64
      %v666 = vpop.permute.xlu0 %665
      %v668 = vadd.f32 %v569, %v666
      %v669 = vtanh.pop %v668
      %v670 = vsub.f32 1.0, %v658
      %672 = vrot.lane.b32.xlu0 %v669, 96
      %v673 = vpop.permute.xlu0 %672
      %v675 = vmul.f32 %v670, %v673
      %676 = vrot.lane.b32.xlu0 %v401, 32
      %v677 = vpop.permute.xlu0 %676
      %v679 = vmul.f32 %v658, %v677
      %v680 = vadd.f32 %v675, %v679
      %v682 = vlaneseq
      %v683 = vshrl.u32 %v682, 7
      %v684 = vsub.s32 0, %v683
      %v685 = vrot.slane %v375, %v684
      %688 = vrot.lane.b32.xlu0 %v680, 96
      %v689 = vpop.permute.xlu0 %688
      %v690 = vsel %vm350, %v689, 0
      %692 = vmatprep.subr.mxu0 0.0
      %693 = vmatpush1.msra.mxu0 0.0
      %694 = vmatprep.subr.mxu0 0.0
      %695 = vmatpush1.msra.mxu0 0.0
      %696 = vmatprep.subr.mxu0 0.0
      %697 = vmatpush1.msra.mxu0 0.0
      %698 = vmatprep.subr.mxu0 0.0
      %699 = vmatpush1.msra.mxu0 0.0
      %700 = vmatprep.subr.mxu0 0.0
      %701 = vmatpush1.msra.mxu0 0.0
      %702 = vmatprep.subr.mxu0 0.0
      %703 = vmatpush1.msra.mxu0 0.0
      %704 = vmatprep.subr.mxu0 0.0
      %705 = vmatpush1.msra.mxu0 0.0
      %706 = vmatprep.subr.mxu0 0.0
      %707 = vmatpush1.msra.mxu0 0.0
      %708 = vmatprep.subr.mxu0 0.0
      %709 = vmatpush1.msra.mxu0 0.0
      %710 = vmatprep.subr.mxu0 0.0
      %711 = vmatpush1.msra.mxu0 0.0
      %712 = vmatprep.subr.mxu0 0.0
      %713 = vmatpush1.msra.mxu0 0.0
      %714 = vmatprep.subr.mxu0 0.0
      %715 = vmatpush1.msra.mxu0 0.0
      %716 = vmatprep.subr.mxu0 0.0
      %717 = vmatpush1.msra.mxu0 %v373
      %718 = vmatprep.subr.mxu0 0.0
      %719 = vmatpush1.msra.mxu0 %v372
      %720 = vmatprep.subr.mxu0 0.0
      %721 = vmatpush1.msra.mxu0 %v371
      %722 = vmatprep.subr.mxu0 0.0
      %723 = vmatpush1.msra.mxu0 %v370
      %724 = vmatprep.subr.mxu0 0.0
      %725 = vmatpush2.msra.mxu0 0.0
      %726 = vmatprep.subr.mxu0 0.0
      %727 = vmatpush2.msra.mxu0 0.0
      %728 = vmatprep.subr.mxu0 0.0
      %729 = vmatpush2.msra.mxu0 0.0
      %730 = vmatprep.subr.mxu0 0.0
      %731 = vmatpush2.msra.mxu0 0.0
      %732 = vmatprep.subr.mxu0 0.0
      %733 = vmatpush2.msra.mxu0 0.0
      %734 = vmatprep.subr.mxu0 0.0
      %735 = vmatpush2.msra.mxu0 0.0
      %736 = vmatprep.subr.mxu0 0.0
      %737 = vmatpush2.msra.mxu0 0.0
      %738 = vmatprep.subr.mxu0 0.0
      %739 = vmatpush2.msra.mxu0 0.0
      %740 = vmatprep.subr.mxu0 0.0
      %741 = vmatpush2.msra.mxu0 0.0
      %742 = vmatprep.subr.mxu0 0.0
      %743 = vmatpush2.msra.mxu0 0.0
      %744 = vmatprep.subr.mxu0 0.0
      %745 = vmatpush2.msra.mxu0 0.0
      %746 = vmatprep.subr.mxu0 0.0
      %747 = vmatpush2.msra.mxu0 0.0
      %748 = vmatprep.subr.mxu0 0.0
      %749 = vmatpush2.msra.mxu0 0.0
      %750 = vmatprep.subr.mxu0 0.0
      %751 = vmatpush2.msra.mxu0 0.0
      %752 = vmatprep.subr.mxu0 0.0
      %753 = vmatpush2.msra.mxu0 0.0
      %754 = vmatprep.subr.mxu0 0.0
      %755 = vmatpush2.msra.mxu0 0.0
      %756 = vmatprep.mubr.f32.mxu0 0.0
      %757 = vmatmul.mubr.f32.gmra.mxu0 %v690
      %v758 = vpop.f32.mrf.mxu0
      %v759 = vadd.f32 %v685, %v758
      %v760 = vpop.f32.mrf.mxu0
      %761 = vdwg.mxu0
      %763 = vrot.lane.b32.xlu0 %v759, 96
      %v764 = vpop.permute.xlu0 %763
      %v766 = vadd.f32 %v569, %v764
      %v767 = vxor.u32 %v766, 2147483648
      %v768 = vmul.f32 %v767, 1.442695
      %v769 = vpow.pop %v768
      %v770 = vadd.f32 %v769, 1.0
      %v771 = vrcp.pop %v770
      %v772 = vmul.f32 1.0, %v771
      %v773 = vadd.f32 %v571, %v764
      %v774 = vxor.u32 %v773, 2147483648
      %v775 = vmul.f32 %v774, 1.442695
      %v776 = vpow.pop %v775
      %v777 = vadd.f32 %v776, 1.0
      %v778 = vrcp.pop %v777
      %v779 = vmul.f32 1.0, %v778
      %780 = vrot.lane.b32.xlu0 %v759, 32
      %v781 = vpop.permute.xlu0 %780
      %v783 = vmul.f32 %v772, %v781
      %785 = vrot.lane.b32.xlu0 %v783, 64
      %v786 = vpop.permute.xlu0 %785
      %v788 = vadd.f32 %v571, %v786
      %v789 = vtanh.pop %v788
      %v790 = vsub.f32 1.0, %v779
      %792 = vrot.lane.b32.xlu0 %v789, 96
      %v793 = vpop.permute.xlu0 %792
      %v795 = vmul.f32 %v790, %v793
      %v797 = vmul.f32 %v779, %v689
      %v798 = vadd.f32 %v795, %v797
      %v800 = vsel %vm350, %v798, 0
      %802 = vmatprep.subr.mxu0 0.0
      %803 = vmatpush1.msra.mxu0 0.0
      %804 = vmatprep.subr.mxu0 0.0
      %805 = vmatpush1.msra.mxu0 0.0
      %806 = vmatprep.subr.mxu0 0.0
      %807 = vmatpush1.msra.mxu0 0.0
      %808 = vmatprep.subr.mxu0 0.0
      %809 = vmatpush1.msra.mxu0 0.0
      %810 = vmatprep.subr.mxu0 0.0
      %811 = vmatpush1.msra.mxu0 0.0
      %812 = vmatprep.subr.mxu0 0.0
      %813 = vmatpush1.msra.mxu0 0.0
      %814 = vmatprep.subr.mxu0 0.0
      %815 = vmatpush1.msra.mxu0 0.0
      %816 = vmatprep.subr.mxu0 0.0
      %817 = vmatpush1.msra.mxu0 0.0
      %818 = vmatprep.subr.mxu0 0.0
      %819 = vmatpush1.msra.mxu0 0.0
      %820 = vmatprep.subr.mxu0 0.0
      %821 = vmatpush1.msra.mxu0 0.0
      %822 = vmatprep.subr.mxu0 0.0
      %823 = vmatpush1.msra.mxu0 0.0
      %824 = vmatprep.subr.mxu0 0.0
      %825 = vmatpush1.msra.mxu0 0.0
      %826 = vmatprep.subr.mxu0 0.0
      %827 = vmatpush1.msra.mxu0 %v379
      %828 = vmatprep.subr.mxu0 0.0
      %829 = vmatpush1.msra.mxu0 %v378
      %830 = vmatprep.subr.mxu0 0.0
      %831 = vmatpush1.msra.mxu0 %v377
      %832 = vmatprep.subr.mxu0 0.0
      %833 = vmatpush1.msra.mxu0 %v376
      %834 = vmatprep.subr.mxu0 0.0
      %835 = vmatpush2.msra.mxu0 0.0
      %836 = vmatprep.subr.mxu0 0.0
      %837 = vmatpush2.msra.mxu0 0.0
      %838 = vmatprep.subr.mxu0 0.0
      %839 = vmatpush2.msra.mxu0 0.0
      %840 = vmatprep.subr.mxu0 0.0
      %841 = vmatpush2.msra.mxu0 0.0
      %842 = vmatprep.subr.mxu0 0.0
      %843 = vmatpush2.msra.mxu0 0.0
      %844 = vmatprep.subr.mxu0 0.0
      %845 = vmatpush2.msra.mxu0 0.0
      %846 = vmatprep.subr.mxu0 0.0
      %847 = vmatpush2.msra.mxu0 0.0
      %848 = vmatprep.subr.mxu0 0.0
      %849 = vmatpush2.msra.mxu0 0.0
      %850 = vmatprep.subr.mxu0 0.0
      %851 = vmatpush2.msra.mxu0 0.0
      %852 = vmatprep.subr.mxu0 0.0
      %853 = vmatpush2.msra.mxu0 0.0
      %854 = vmatprep.subr.mxu0 0.0
      %855 = vmatpush2.msra.mxu0 0.0
      %856 = vmatprep.subr.mxu0 0.0
      %857 = vmatpush2.msra.mxu0 0.0
      %858 = vmatprep.subr.mxu0 0.0
      %859 = vmatpush2.msra.mxu0 0.0
      %860 = vmatprep.subr.mxu0 0.0
      %861 = vmatpush2.msra.mxu0 0.0
      %862 = vmatprep.subr.mxu0 0.0
      %863 = vmatpush2.msra.mxu0 0.0
      %864 = vmatprep.subr.mxu0 0.0
      %865 = vmatpush2.msra.mxu0 0.0
      %866 = vmatprep.mubr.f32.mxu0 0.0
      %867 = vmatmul.mubr.f32.gmra.mxu0 %v800
      %v868 = vpop.f32.mrf.mxu0
      %v869 = vadd.f32 0.0, %v868
      %v870 = vpop.f32.mrf.mxu0
      %871 = vdwg.mxu0
      %873 = vrot.lane.b32.xlu0 %v400, 96
      %v874 = vpop.permute.xlu0 %873
      %v876 = vadd.f32 %v869, %v874
      %vm877 = vcmp.gt.f32.partialorder %v876, 0.0
      %v878 = vmul.f32 %v876, 1.442695
      %v879 = vpow.pop %v878
      %v880 = vsub.f32 %v879, 1.0
      %v881 = vsel %vm877, %v876, %v880
      %v883 = vlaneseq
      %v884 = vshrl.u32 %v883, 7
      %v885 = vsub.s32 0, %v884
      %v886 = vrot.slane %v384, %v885
      %v889 = vsel %vm350, %v881, 0
      %891 = vmatprep.subr.mxu0 0.0
      %892 = vmatpush1.msra.mxu0 0.0
      %893 = vmatprep.subr.mxu0 0.0
      %894 = vmatpush1.msra.mxu0 0.0
      %895 = vmatprep.subr.mxu0 0.0
      %896 = vmatpush1.msra.mxu0 0.0
      %897 = vmatprep.subr.mxu0 0.0
      %898 = vmatpush1.msra.mxu0 0.0
      %899 = vmatprep.subr.mxu0 0.0
      %900 = vmatpush1.msra.mxu0 0.0
      %901 = vmatprep.subr.mxu0 0.0
      %902 = vmatpush1.msra.mxu0 0.0
      %903 = vmatprep.subr.mxu0 0.0
      %904 = vmatpush1.msra.mxu0 0.0
      %905 = vmatprep.subr.mxu0 0.0
      %906 = vmatpush1.msra.mxu0 0.0
      %907 = vmatprep.subr.mxu0 0.0
      %908 = vmatpush1.msra.mxu0 0.0
      %909 = vmatprep.subr.mxu0 0.0
      %910 = vmatpush1.msra.mxu0 0.0
      %911 = vmatprep.subr.mxu0 0.0
      %912 = vmatpush1.msra.mxu0 0.0
      %913 = vmatprep.subr.mxu0 0.0
      %914 = vmatpush1.msra.mxu0 0.0
      %915 = vmatprep.subr.mxu0 0.0
      %916 = vmatpush1.msra.mxu0 %v383
      %917 = vmatprep.subr.mxu0 0.0
      %918 = vmatpush1.msra.mxu0 %v382
      %919 = vmatprep.subr.mxu0 0.0
      %920 = vmatpush1.msra.mxu0 %v381
      %921 = vmatprep.subr.mxu0 0.0
      %922 = vmatpush1.msra.mxu0 %v380
      %923 = vmatprep.subr.mxu0 0.0
      %924 = vmatpush2.msra.mxu0 0.0
      %925 = vmatprep.subr.mxu0 0.0
      %926 = vmatpush2.msra.mxu0 0.0
      %927 = vmatprep.subr.mxu0 0.0
      %928 = vmatpush2.msra.mxu0 0.0
      %929 = vmatprep.subr.mxu0 0.0
      %930 = vmatpush2.msra.mxu0 0.0
      %931 = vmatprep.subr.mxu0 0.0
      %932 = vmatpush2.msra.mxu0 0.0
      %933 = vmatprep.subr.mxu0 0.0
      %934 = vmatpush2.msra.mxu0 0.0
      %935 = vmatprep.subr.mxu0 0.0
      %936 = vmatpush2.msra.mxu0 0.0
      %937 = vmatprep.subr.mxu0 0.0
      %938 = vmatpush2.msra.mxu0 0.0
      %939 = vmatprep.subr.mxu0 0.0
      %940 = vmatpush2.msra.mxu0 0.0
      %941 = vmatprep.subr.mxu0 0.0
      %942 = vmatpush2.msra.mxu0 0.0
      %943 = vmatprep.subr.mxu0 0.0
      %944 = vmatpush2.msra.mxu0 0.0
      %945 = vmatprep.subr.mxu0 0.0
      %946 = vmatpush2.msra.mxu0 0.0
      %947 = vmatprep.subr.mxu0 0.0
      %948 = vmatpush2.msra.mxu0 0.0
      %949 = vmatprep.subr.mxu0 0.0
      %950 = vmatpush2.msra.mxu0 0.0
      %951 = vmatprep.subr.mxu0 0.0
      %952 = vmatpush2.msra.mxu0 0.0
      %953 = vmatprep.subr.mxu0 0.0
      %954 = vmatpush2.msra.mxu0 0.0
      %955 = vmatprep.mubr.f32.mxu0 0.0
      %956 = vmatmul.mubr.f32.gmra.mxu0 %v889
      %v957 = vpop.f32.mrf.mxu0
      %v958 = vadd.f32 %v886, %v957
      %v959 = vpop.f32.mrf.mxu0
      %960 = vdwg.mxu0
      %v961 = vmul.f32 %v958, 1.442695
      %v962 = vpow.pop %v961
      %v963 = vadd.f32 %v962, 1.0
      %965 = vrot.lane.b32.xlu0 %v398, 113
      %v966 = vpop.permute.xlu0 %965
      %v968 = vmul.f32 %v963, %v966
      %970 = vrot.lane.b32.xlu0 %v968, 112
      %v971 = vpop.permute.xlu0 %970
      %v973 = vadd.f32 %v958, %v971
      %v975 = vlaneseq
      %v976 = vshrl.u32 %v975, 7
      %v977 = vsub.s32 0, %v976
      %v978 = vrot.slane %v389, %v977
      %980 = vrot.lane.b32.xlu0 %v881, 96
      %v981 = vpop.permute.xlu0 %980
      %v982 = vsel %vm350, %v981, 0
      %984 = vmatprep.subr.mxu0 0.0
      %985 = vmatpush1.msra.mxu0 0.0
      %986 = vmatprep.subr.mxu0 0.0
      %987 = vmatpush1.msra.mxu0 0.0
      %988 = vmatprep.subr.mxu0 0.0
      %989 = vmatpush1.msra.mxu0 0.0
      %990 = vmatprep.subr.mxu0 0.0
      %991 = vmatpush1.msra.mxu0 0.0
      %992 = vmatprep.subr.mxu0 0.0
      %993 = vmatpush1.msra.mxu0 0.0
      %994 = vmatprep.subr.mxu0 0.0
      %995 = vmatpush1.msra.mxu0 0.0
      %996 = vmatprep.subr.mxu0 0.0
      %997 = vmatpush1.msra.mxu0 0.0
      %998 = vmatprep.subr.mxu0 0.0
      %999 = vmatpush1.msra.mxu0 0.0
      %1000 = vmatprep.subr.mxu0 0.0
      %1001 = vmatpush1.msra.mxu0 0.0
      %1002 = vmatprep.subr.mxu0 0.0
      %1003 = vmatpush1.msra.mxu0 0.0
      %1004 = vmatprep.subr.mxu0 0.0
      %1005 = vmatpush1.msra.mxu0 0.0
      %1006 = vmatprep.subr.mxu0 0.0
      %1007 = vmatpush1.msra.mxu0 0.0
      %1008 = vmatprep.subr.mxu0 0.0
      %1009 = vmatpush1.msra.mxu0 %v388
      %1010 = vmatprep.subr.mxu0 0.0
      %1011 = vmatpush1.msra.mxu0 %v387
      %1012 = vmatprep.subr.mxu0 0.0
      %1013 = vmatpush1.msra.mxu0 %v386
      %1014 = vmatprep.subr.mxu0 0.0
      %1015 = vmatpush1.msra.mxu0 %v385
      %1016 = vmatprep.subr.mxu0 0.0
      %1017 = vmatpush2.msra.mxu0 0.0
      %1018 = vmatprep.subr.mxu0 0.0
      %1019 = vmatpush2.msra.mxu0 0.0
      %1020 = vmatprep.subr.mxu0 0.0
      %1021 = vmatpush2.msra.mxu0 0.0
      %1022 = vmatprep.subr.mxu0 0.0
      %1023 = vmatpush2.msra.mxu0 0.0
      %1024 = vmatprep.subr.mxu0 0.0
      %1025 = vmatpush2.msra.mxu0 0.0
      %1026 = vmatprep.subr.mxu0 0.0
      %1027 = vmatpush2.msra.mxu0 0.0
      %1028 = vmatprep.subr.mxu0 0.0
      %1029 = vmatpush2.msra.mxu0 0.0
      %1030 = vmatprep.subr.mxu0 0.0
      %1031 = vmatpush2.msra.mxu0 0.0
      %1032 = vmatprep.subr.mxu0 0.0
      %1033 = vmatpush2.msra.mxu0 0.0
      %1034 = vmatprep.subr.mxu0 0.0
      %1035 = vmatpush2.msra.mxu0 0.0
      %1036 = vmatprep.subr.mxu0 0.0
      %1037 = vmatpush2.msra.mxu0 0.0
      %1038 = vmatprep.subr.mxu0 0.0
      %1039 = vmatpush2.msra.mxu0 0.0
      %1040 = vmatprep.subr.mxu0 0.0
      %1041 = vmatpush2.msra.mxu0 0.0
      %1042 = vmatprep.subr.mxu0 0.0
      %1043 = vmatpush2.msra.mxu0 0.0
      %1044 = vmatprep.subr.mxu0 0.0
      %1045 = vmatpush2.msra.mxu0 0.0
      %1046 = vmatprep.subr.mxu0 0.0
      %1047 = vmatpush2.msra.mxu0 0.0
      %1048 = vmatprep.mubr.f32.mxu0 0.0
      %1049 = vmatmul.mubr.f32.gmra.mxu0 %v982
      %v1050 = vpop.f32.mrf.mxu0
      %v1051 = vadd.f32 %v978, %v1050
      %v1052 = vpop.f32.mrf.mxu0
      %1053 = vdwg.mxu0
      %v1054 = vmul.f32 %v1051, 1.442695
      %v1055 = vpow.pop %v1054
      %v1056 = vadd.f32 %v1055, 1.0
      %1057 = vrot.lane.b32.xlu0 %v398, 97
      %v1058 = vpop.permute.xlu0 %1057
      %v1060 = vmul.f32 %v1056, %v1058
      %1062 = vrot.lane.b32.xlu0 %v1060, 112
      %v1063 = vpop.permute.xlu0 %1062
      %v1065 = vadd.f32 %v1051, %v1063
      %1066 = vst.msk [vmem:[#allocation3] sm:$0xff] %vm350, %v798
      %1067 = vst.msk [vmem:[#allocation4] sm:$0xff] %vm353, %v1065
      %1069 = vrot.lane.b32.xlu0 %v973, 32
      %v1070 = vpop.permute.xlu0 %1069
      %1073 = vrot.lane.b32.xlu0 %v1065, 48
      %v1074 = vpop.permute.xlu0 %1073
      %1077 = vrot.lane.b32.xlu0 %v958, 64
      %v1078 = vpop.permute.xlu0 %1077
      %1081 = vrot.lane.b32.xlu0 %v1051, 96
      %v1082 = vpop.permute.xlu0 %1081
      %v1084 = vsel %vm350, %v798, %v1070
      %vm1085 = vcmask 392192
      %v1086 = vsel %vm1085, %v1084, %v1074
      %vm1087 = vcmask 523264
      %v1088 = vsel %vm1087, %v1086, %v1078
      %v1089 = vsel %vm340, %v1088, %v1082
      %s1090 = scalar_lea.vmem [#allocation22], %s396
      %1091 = vst [vmem:[%s1090] sm:$0xff] %v1089
    $region106: #{tpu_custom_call.1} parent=1 // loop_footer
      %s395 = sadd.s32 1, %s391
    $region107: #{tpu_custom_call.1} parent=1 // loop_footer_branch
      %390 = sbr.rel target = $region103
    $region108: #{tpu_custom_call.1} parent=1 // loop_exit
      _
    // Predicated region
    $region109: #{tpu_custom_call.1} parent=1 // pred_check
      _
    $region110: #{tpu_custom_call.1} parent=1 // pred_check_branch
      %1093 = sbr.rel (0) target = $region112
    $region111: #{tpu_custom_call.1} parent=1 // pred_region
      %s1095 = ssub.s32 1024, 1024
      %1096 = vsyncadd [#allocation7], %s1095
      %s1097 = sshll.u32 [#allocation22], 4
      %s1098 = int_to_ptr.vmem [resolvable:$true] %s1097
      %1103 = dma.vmem_to_hbm [thread:$0]  %s1098, 1024, %s15, [#allocation7], 128, 128, 8
    $region112: #{tpu_custom_call.1} parent=1 // pred_fallthru
      _
    // Predicated region
    $region113: #{tpu_custom_call.1} parent=1 // pred_check
      _
    $region114: #{tpu_custom_call.1} parent=1 // pred_check_branch
      %1105 = sbr.rel (0) target = $region116
    $region115: #{tpu_custom_call.1} parent=1 // pred_region
      %1106 = dma.done [#allocation7], 1024
    $region116: #{tpu_custom_call.1} parent=1 // pred_fallthru
      _
    %1107 = vsyncpa [#allocation6], 1
    %1108 = vsyncpa [#allocation9], 1
    %1109 = vsyncpa [#allocation12], 1
    %1110 = vsyncpa [#allocation15], 1
    %1111 = vsyncpa [#allocation18], 1
    %1112 = vsyncpa [#allocation21], 1
    %1113 = vsyncpa [#allocation7], 1

</llo_original>
